<compile_context>
chip_gen: v7x
topology: tpu7x:2x2x1
jax: 0.10.0
libtpu: 0.0.40
codegen_flags: <defaults>
</compile_context>

<pallas_src>
import jax
import jax.numpy as jnp
from jax import lax
from jax.experimental import pallas as pl
from jax.experimental.pallas import tpu as pltpu

_EPS = 1e-5


# ----------------------------------------------------------------------------
# BN folding / weight preparation (shared by kernel wrapper and reference)
# ----------------------------------------------------------------------------
def _fold_bn(gamma, beta, mean, var):
    scale = gamma / jnp.sqrt(var + _EPS)
    return scale, beta - mean * scale


def _prepare_folded_weights(params, compute_dtype):
    """Fold BN scales into (transposed) conv weights; biases stay f32."""
    s1, b1 = _fold_bn(*params["bn1"])
    s2, b2 = _fold_bn(*params["bn2"])
    s3, b3 = _fold_bn(*params["bn3"])
    w1t = (params["w1"].T * s1[:, None]).astype(compute_dtype)          # (planes, Cin)
    # params["w2"]: (3, 3, in, out) -> (3, 3, out, in), BN2 scale on out rows
    w2t = (params["w2"].transpose(0, 1, 3, 2)
           * s2[None, None, :, None]).astype(compute_dtype)
    w3t = (params["w3"].T * s3[:, None]).astype(compute_dtype)          # (c3, planes)
    f32 = jnp.float32
    return w1t, b1.astype(f32), w2t, b2.astype(f32), w3t, b3.astype(f32)


def _round_up(x, m):
    return -(-x // m) * m


def _pick_tile_h(H, W, d, N, per_lane_bytes, tile_budget_bytes):
    """Largest row-tile height that divides H, is >= d, keeps the tile
    lane-legal ((th*W) % 128 == 0 unless th == H) and fits the VMEM budget.
    Prefers >= 2 total parallel grid units so v7x's two TensorCores are fed."""
    max_lanes = max(tile_budget_bytes // max(per_lane_bytes, 1), 128)
    legal = []
    for th in range(H, 0, -1):                      # descending -> biggest first
        if H % th or th < max(d, 1):
            continue
        s = th * W
        if th != H and s % 128:
            continue
        if s <= max_lanes:
            legal.append(th)
    if not legal:
        return H                                    # full-dim block is always legal
    multi = [th for th in legal if N * (H // th) >= 2]
    return (multi or legal)[0]


# ----------------------------------------------------------------------------
# Fused Bottleneck forward
# ----------------------------------------------------------------------------
def bottleneck_forward(x_nchw, params, dilation=1, compute_dtype=jnp.bfloat16):
    # stride=1 / downsample=None case (residual shapes must match).
    N, Cin, H, W = x_nchw.shape
    d = int(dilation)
    planes = params["w1"].shape[1]
    c3 = params["w3"].shape[1]
    if c3 != Cin:
        raise ValueError("downsample=None requires planes*expansion == inplanes")
    assert 0 < d < min(H, W)

    f32 = jnp.float32
    out_dtype = x_nchw.dtype
    w1t, b1, w2t, b2, w3t, b3 = _prepare_folded_weights(params, compute_dtype)
    w2f = w2t.reshape(9, planes, planes)             # (kh*3+kw, out, in)
    b1c = b1.reshape(planes, 1)
    b2c = b2.reshape(planes, 1)
    b3c = b3.reshape(c3, 1)

    # Per-generation VMEM budget: v7x (64 MiB physical) -> ~48 MiB,
    # v5e/v6e (128 MiB) -> ~96 MiB; conservative fallback if no device info.
    try:
        vmem_cap = int(pltpu.get_tpu_info().vmem_capacity_bytes)
    except Exception:
        vmem_cap = 64 * 1024 * 1024
    vmem_limit = min(vmem_cap * 3 // 4, 100 * 1024 * 1024)

    cbytes = jnp.dtype(compute_dtype).itemsize
    obytes = jnp.dtype(out_dtype).itemsize
    # VMEM bytes per lane of a row tile: double-buffered x/out streams, the
    # h1 halo scratch and ~4 live f32 (planes, S) compute intermediates.
    per_lane = 2 * Cin * cbytes + 2 * c3 * obytes + planes * cbytes + 4 * planes * 4
    tile_h = _pick_tile_h(H, W, d, N, per_lane, vmem_limit // 2)
    n_tiles = H // tile_h
    has_halo = n_tiles > 1

    S = tile_h * W                     # flattened spatial size of one row tile
    dW = d * W                         # flattened size of the d halo rows
    HW = H * W
    L = _round_up(d + dW, 128)         # lane-aligned start of the centre h1 slab
    scratch_w = L + S + dW + d
    # h1 flat lane layout: [L-dW-d, L-dW) left guard (zeros)
    #                      [L-dW, L)      top-halo rows (zeros above the image)
    #                      [L, L+S)       centre rows (128-aligned store)
    #                      [L+S, L+S+dW)  bottom-halo rows
    #                      [L+S+dW, ...)  right guard (zeros)

    # NCHW flattened over spatial is a free view; spatial maps to the lane axis.
    x_flat = x_nchw.reshape(N, Cin, HW).astype(compute_dtype)

    # Width zero-padding masks for the shifted 3x3 taps.
    col = jnp.arange(S, dtype=jnp.int32) % W
    masks = jnp.stack([col >= d, col < W - d], axis=0).astype(f32)      # (2, S)

    def full_spec(*shape):
        nd = len(shape)
        return pl.BlockSpec(shape, lambda n, i, _nd=nd: (0,) * _nd)

    def compute_tile(xc_ref, mask_ref, w1_ref, b1_ref, w2_ref, b2_ref,
                     w3_ref, b3_ref, o_ref, h1_ref, halo):
        i = pl.program_id(1)

        def conv1(xt):                               # (Cin, L) -> (planes, L) f32
            y = jnp.dot(w1_ref[...], xt, preferred_element_type=f32)
            return jnp.maximum(y + b1_ref[...], 0.0)

        if halo is not None:
            # Fetch ONLY the 2*d halo rows of x (clamped; masked to zero at the
            # image borders below) while the centre conv1 runs.
            x_any_ref, tbuf, bbuf, sems = halo
            n = pl.program_id(0)
            top_start = jnp.maximum(i * S - dW, 0)
            bot_start = jnp.minimum((i + 1) * S, HW - dW)
            cp_top = pltpu.make_async_copy(
                x_any_ref.at[n, :, pl.ds(top_start, dW)], tbuf, sems.at[0])
            cp_bot = pltpu.make_async_copy(
                x_any_ref.at[n, :, pl.ds(bot_start, dW)], bbuf, sems.at[1])
            cp_top.start()
            cp_bot.start()

        # ---- stage 1: 1x1 conv + BN + ReLU, lane-aligned store into h1 -----
        h1_ref[:, L:L + S] = conv1(xc_ref[...]).astype(h1_ref.dtype)

        zg = jnp.zeros((planes, d), h1_ref.dtype)
        h1_ref[:, L - dW - d:L - dW] = zg            # left guard
        h1_ref[:, L + S + dW:L + S + dW + d] = zg    # right guard

        if halo is None:
            # Whole image in one row tile: rows above/below are zero padding.
            zh = jnp.zeros((planes, dW), h1_ref.dtype)
            h1_ref[:, L - dW:L] = zh
            h1_ref[:, L + S:L + S + dW] = zh
        else:
            top_valid = (i > 0).astype(f32)
            bot_valid = (i < n_tiles - 1).astype(f32)
            cp_top.wait()
            h1_ref[:, L - dW:L] = (conv1(tbuf[...]) * top_valid).astype(h1_ref.dtype)
            cp_bot.wait()
            h1_ref[:, L + S:L + S + dW] = (conv1(bbuf[...]) * bot_valid).astype(h1_ref.dtype)

        # ---- stage 2: 3x3 dilated conv as 9 accumulated MXU dots ------------
        # RHS taps are shifted slices of the h1 scratch (no im2col concat);
        # width zero-padding is applied once per tap column after the dots.
        def col_sum(kw):
            acc = None
            for kh in range(3):
                s0 = L + (kh - 1) * dW + (kw - 1) * d
                p = jnp.dot(w2_ref[kh * 3 + kw], h1_ref[:, s0:s0 + S],
                            preferred_element_type=f32)
                acc = p if acc is None else acc + p
            return acc

        h2 = col_sum(1)
        h2 = h2 + col_sum(0) * mask_ref[0:1, :]      # zero-pad left columns
        h2 = h2 + col_sum(2) * mask_ref[1:2, :]      # zero-pad right columns
        h2 = jnp.maximum(h2 + b2_ref[...], 0.0).astype(compute_dtype)

        # ---- stage 3: 1x1 conv + BN + residual + ReLU (f32 epilogue) --------
        y = jnp.dot(w3_ref[...], h2, preferred_element_type=f32)
        y = y + b3_ref[...] + xc_ref[...].astype(f32)     # residual (Cin == c3)
        o_ref[...] = jnp.maximum(y, 0.0).astype(o_ref.dtype)

    xc_spec = pl.BlockSpec((None, Cin, S), lambda n, i: (n, 0, i))
    out_spec = pl.BlockSpec((None, c3, S), lambda n, i: (n, 0, i))
    common_in_specs = [
        full_spec(2, S),
        full_spec(planes, Cin), full_spec(planes, 1),
        full_spec(9, planes, planes), full_spec(planes, 1),
        full_spec(c3, planes), full_spec(c3, 1),
    ]
    scratch = [pltpu.VMEM((planes, scratch_w), compute_dtype)]

    if has_halo:
        def kernel(xc, x_any, mask, w1, b1r, w2, b2r, w3, b3r, o, h1,
                   tbuf, bbuf, sems):
            compute_tile(xc, mask, w1, b1r, w2, b2r, w3, b3r, o, h1,
                         (x_any, tbuf, bbuf, sems))
        in_specs = [xc_spec, pl.BlockSpec(memory_space=pl.ANY)] + common_in_specs
        scratch = scratch + [pltpu.VMEM((Cin, dW), compute_dtype),
                             pltpu.VMEM((Cin, dW), compute_dtype),
                             pltpu.SemaphoreType.DMA((2,))]
        args = (x_flat, x_flat, masks, w1t, b1c, w2f, b2c, w3t, b3c)
    else:
        def kernel(xc, mask, w1, b1r, w2, b2r, w3, b3r, o, h1):
            compute_tile(xc, mask, w1, b1r, w2, b2r, w3, b3r, o, h1, None)
        in_specs = [xc_spec] + common_in_specs
        args = (x_flat, masks, w1t, b1c, w2f, b2c, w3t, b3c)

    out_flat = pl.pallas_call(
        kernel,
        out_shape=jax.ShapeDtypeStruct((N, c3, HW), out_dtype),
        grid=(N, n_tiles),
        in_specs=in_specs,
        out_specs=out_spec,
        scratch_shapes=scratch,
        compiler_params=pltpu.CompilerParams(
            dimension_semantics=("parallel", "parallel"),
            vmem_limit_bytes=vmem_limit),
    )(*args)

    return out_flat.reshape(N, c3, H, W)             # NCHW, like the PyTorch module


# ----------------------------------------------------------------------------
# Parameter setup
# ----------------------------------------------------------------------------
def init_params(key, inplanes, planes, expansion=4):
    ks = jax.random.split(key, 3)
    c3 = planes * expansion

    def bn(c, shift):
        gamma = 1.0 + 0.05 * jnp.arange(c, dtype=jnp.float32)
        beta = 0.02 * jnp.arange(c, dtype=jnp.float32) - shift
        mean = 0.01 * jnp.arange(c, dtype=jnp.float32)
        var = 1.0 + 0.03 * jnp.arange(c, dtype=jnp.float32)
        return gamma, beta, mean, var

    return {
        "w1": 0.1 * jax.random.normal(ks[0], (inplanes, planes), jnp.float32),
        "bn1": bn(planes, 0.0),
        "w2": 0.1 * jax.random.normal(ks[1], (3, 3, planes, planes), jnp.float32),
        "bn2": bn(planes, 0.01),
        "w3": 0.1 * jax.random.normal(ks[2], (planes, c3), jnp.float32),
        "bn3": bn(c3, 0.02),
    }


# ----------------------------------------------------------------------------
# Pure-JAX reference (same BN-folded weights, selectable compute precision)
# ----------------------------------------------------------------------------
def bottleneck_reference(x_nchw, params, dilation=1, compute_dtype=jnp.float32):
    f32 = jnp.float32
    w1t, b1, w2t, b2, w3t, b3 = _prepare_folded_weights(params, compute_dtype)
    x = jnp.transpose(x_nchw, (0, 2, 3, 1)).astype(compute_dtype)       # NHWC
    h = jnp.einsum("nhwc,pc->nhwp", x, w1t, preferred_element_type=f32)
    h = jnp.maximum(h + b1, 0.0).astype(compute_dtype)
    k2 = jnp.transpose(w2t, (0, 1, 3, 2))                               # (3,3,in,out)
    h = lax.conv_general_dilated(
        h, k2, window_strides=(1, 1),
        padding=[(dilation, dilation), (dilation, dilation)],
        rhs_dilation=(dilation, dilation),
        dimension_numbers=("NHWC", "HWIO", "NHWC"),
        preferred_element_type=f32)
    h = jnp.maximum(h + b2, 0.0).astype(compute_dtype)
    y = jnp.einsum("nhwp,dp->nhwd", h, w3t, preferred_element_type=f32)
    y = jnp.maximum(y + b3 + x.astype(f32), 0.0)
    return jnp.transpose(y, (0, 3, 1, 2))


if __name__ == "__main__":
    # Bottleneck(inplanes=16, planes=4, stride=1, dilation=1, dimension=2)
    # -> output channels = planes * expansion = 16 = inplanes (downsample=None).
    N, inplanes, planes, H, W = 2, 16, 4, 16, 16

    key = jax.random.PRNGKey(0)
    kx, kp = jax.random.split(key)
    x = jax.random.normal(kx, (N, inplanes, H, W), jnp.float32)  # NCHW input
    params = init_params(kp, inplanes, planes)

    out = jax.block_until_ready(bottleneck_forward(x, params, dilation=1))
    ref_q = jax.block_until_ready(
        bottleneck_reference(x, params, dilation=1, compute_dtype=jnp.bfloat16))
    ref_f = jax.block_until_ready(
        bottleneck_reference(x, params, dilation=1, compute_dtype=jnp.float32))

    assert out.shape == (N, planes * 4, H, W), out.shape
    # Primary check: bf16-matched reference (same folded/quantized weights).
    assert jnp.allclose(out, ref_q, rtol=1e-2, atol=1e-2), float(
        jnp.max(jnp.abs(out - ref_q)))
    # Sanity check against the full-precision reference (bf16 quantization noise).
    assert jnp.allclose(out, ref_f, rtol=1e-1, atol=1e-1), float(
        jnp.max(jnp.abs(out - ref_f)))

    print("KERNEL_OK")
</pallas_src>

<mosaic_0001>
module attributes {stable_mosaic.version = 11 : i64} {
  func.func @kernel(%arg0: i32, %arg1: i32, %arg2: memref<1x16x256xbf16, #tpu.memory_space<vmem>>, %arg3: memref<2x256xf32, #tpu.memory_space<vmem>>, %arg4: memref<4x16xbf16, #tpu.memory_space<vmem>>, %arg5: memref<4x1xf32, #tpu.memory_space<vmem>>, %arg6: memref<9x4x4xbf16, #tpu.memory_space<vmem>>, %arg7: memref<4x1xf32, #tpu.memory_space<vmem>>, %arg8: memref<16x4xbf16, #tpu.memory_space<vmem>>, %arg9: memref<16x1xf32, #tpu.memory_space<vmem>>, %arg10: memref<1x16x256xf32, #tpu.memory_space<vmem>>, %arg11: memref<4x401xbf16, #tpu.memory_space<vmem>>) attributes {dimension_semantics = [#tpu.dimension_semantics<parallel>, #tpu.dimension_semantics<parallel>], iteration_bounds = array<i64: 2, 1>, scalar_prefetch = 0 : i64, scratch_operands = 1 : i64, tpu.core_type = #tpu.core_type<tc>, window_params = [{transform_indices = @transform_0, window_bounds = array<i64: 1, 16, 256>}, {pipeline_mode = #tpu.pipeline_mode<synchronous>, transform_indices = @transform_1, window_bounds = array<i64: 2, 256>}, {pipeline_mode = #tpu.pipeline_mode<synchronous>, transform_indices = @transform_2, window_bounds = array<i64: 4, 16>}, {pipeline_mode = #tpu.pipeline_mode<synchronous>, transform_indices = @transform_3, window_bounds = array<i64: 4, 1>}, {pipeline_mode = #tpu.pipeline_mode<synchronous>, transform_indices = @transform_4, window_bounds = array<i64: 9, 4, 4>}, {pipeline_mode = #tpu.pipeline_mode<synchronous>, transform_indices = @transform_5, window_bounds = array<i64: 4, 1>}, {pipeline_mode = #tpu.pipeline_mode<synchronous>, transform_indices = @transform_6, window_bounds = array<i64: 16, 4>}, {pipeline_mode = #tpu.pipeline_mode<synchronous>, transform_indices = @transform_7, window_bounds = array<i64: 16, 1>}, {transform_indices = @transform_8, window_bounds = array<i64: 1, 16, 256>}]} {
    %c0 = arith.constant 0 : index
    %c0_0 = arith.constant 0 : index
    %c0_1 = arith.constant 0 : index
    %0 = vector.load %arg2[%c0, %c0_0, %c0_1] : memref<1x16x256xbf16, #tpu.memory_space<vmem>>, vector<1x16x256xbf16>
    %1 = vector.shape_cast %0 : vector<1x16x256xbf16> to vector<16x256xbf16>
    %c0_2 = arith.constant 0 : index
    %c0_3 = arith.constant 0 : index
    %2 = vector.load %arg4[%c0_2, %c0_3] : memref<4x16xbf16, #tpu.memory_space<vmem>>, vector<4x16xbf16>
    %cst = arith.constant dense<0.000000e+00> : vector<4x256xf32>
    %3 = tpu.matmul %2, %1, %cst {dimension_numbers = #tpu.dot_dimension_numbers<[1], [0], [0], [1], [0, 0, 1, 1], [], []>} : vector<4x16xbf16>, vector<16x256xbf16>, vector<4x256xf32> -> vector<4x256xf32>
    %c0_4 = arith.constant 0 : index
    %c0_5 = arith.constant 0 : index
    %4 = vector.load %arg5[%c0_4, %c0_5] : memref<4x1xf32, #tpu.memory_space<vmem>>, vector<4x1xf32>
    %5 = vector.broadcast %4 : vector<4x1xf32> to vector<4x256xf32>
    %6 = arith.addf %3, %5 : vector<4x256xf32>
    %cst_6 = arith.constant 0.000000e+00 : f32
    %7 = vector.broadcast %cst_6 : f32 to vector<4x256xf32>
    %8 = arith.maximumf %6, %7 : vector<4x256xf32>
    %9 = arith.truncf %8 : vector<4x256xf32> to vector<4x256xbf16>
    %c0_7 = arith.constant 0 : index
    %c128 = arith.constant 128 : index
    %10 = vector.load %arg11[%c0_7, %c128] : memref<4x401xbf16, #tpu.memory_space<vmem>>, vector<4x256xbf16>
    tpu.vector_store %arg11[%c0_7, %c128], %9 {strides = array<i32>} : memref<4x401xbf16, #tpu.memory_space<vmem>>, vector<4x256xbf16>,
    %cst_8 = arith.constant 0.000000e+00 : bf16
    %11 = vector.broadcast %cst_8 : bf16 to vector<4x1xbf16>
    %c0_9 = arith.constant 0 : index
    %c111 = arith.constant 111 : index
    %12 = vector.load %arg11[%c0_9, %c111] : memref<4x401xbf16, #tpu.memory_space<vmem>>, vector<4x1xbf16>
    tpu.vector_store %arg11[%c0_9, %c111], %11 {strides = array<i32>} : memref<4x401xbf16, #tpu.memory_space<vmem>>, vector<4x1xbf16>,
    %c0_10 = arith.constant 0 : index
    %c400 = arith.constant 400 : index
    %13 = vector.load %arg11[%c0_10, %c400] : memref<4x401xbf16, #tpu.memory_space<vmem>>, vector<4x1xbf16>
    tpu.vector_store %arg11[%c0_10, %c400], %11 {strides = array<i32>} : memref<4x401xbf16, #tpu.memory_space<vmem>>, vector<4x1xbf16>,
    %cst_11 = arith.constant 0.000000e+00 : bf16
    %14 = vector.broadcast %cst_11 : bf16 to vector<4x16xbf16>
    %c0_12 = arith.constant 0 : index
    %c112 = arith.constant 112 : index
    %15 = vector.load %arg11[%c0_12, %c112] : memref<4x401xbf16, #tpu.memory_space<vmem>>, vector<4x16xbf16>
    tpu.vector_store %arg11[%c0_12, %c112], %14 {strides = array<i32>} : memref<4x401xbf16, #tpu.memory_space<vmem>>, vector<4x16xbf16>,
    %c0_13 = arith.constant 0 : index
    %c384 = arith.constant 384 : index
    %16 = vector.load %arg11[%c0_13, %c384] : memref<4x401xbf16, #tpu.memory_space<vmem>>, vector<4x16xbf16>
    tpu.vector_store %arg11[%c0_13, %c384], %14 {strides = array<i32>} : memref<4x401xbf16, #tpu.memory_space<vmem>>, vector<4x16xbf16>,
    %c1 = arith.constant 1 : index
    %c0_14 = arith.constant 0 : index
    %c0_15 = arith.constant 0 : index
    %17 = vector.load %arg6[%c1, %c0_14, %c0_15] : memref<9x4x4xbf16, #tpu.memory_space<vmem>>, vector<1x4x4xbf16>
    %18 = vector.shape_cast %17 : vector<1x4x4xbf16> to vector<4x4xbf16>
    %c0_16 = arith.constant 0 : index
    %c112_17 = arith.constant 112 : index
    %19 = vector.load %arg11[%c0_16, %c112_17] : memref<4x401xbf16, #tpu.memory_space<vmem>>, vector<4x256xbf16>
    %cst_18 = arith.constant dense<0.000000e+00> : vector<4x256xf32>
    %20 = tpu.matmul %18, %19, %cst_18 {dimension_numbers = #tpu.dot_dimension_numbers<[1], [0], [0], [1], [0, 0, 1, 1], [], []>} : vector<4x4xbf16>, vector<4x256xbf16>, vector<4x256xf32> -> vector<4x256xf32>
    %c4 = arith.constant 4 : index
    %c0_19 = arith.constant 0 : index
    %c0_20 = arith.constant 0 : index
    %21 = vector.load %arg6[%c4, %c0_19, %c0_20] : memref<9x4x4xbf16, #tpu.memory_space<vmem>>, vector<1x4x4xbf16>
    %22 = vector.shape_cast %21 : vector<1x4x4xbf16> to vector<4x4xbf16>
    %c0_21 = arith.constant 0 : index
    %c128_22 = arith.constant 128 : index
    %23 = vector.load %arg11[%c0_21, %c128_22] : memref<4x401xbf16, #tpu.memory_space<vmem>>, vector<4x256xbf16>
    %cst_23 = arith.constant dense<0.000000e+00> : vector<4x256xf32>
    %24 = tpu.matmul %22, %23, %cst_23 {dimension_numbers = #tpu.dot_dimension_numbers<[1], [0], [0], [1], [0, 0, 1, 1], [], []>} : vector<4x4xbf16>, vector<4x256xbf16>, vector<4x256xf32> -> vector<4x256xf32>
    %25 = arith.addf %20, %24 : vector<4x256xf32>
    %c7 = arith.constant 7 : index
    %c0_24 = arith.constant 0 : index
    %c0_25 = arith.constant 0 : index
    %26 = vector.load %arg6[%c7, %c0_24, %c0_25] : memref<9x4x4xbf16, #tpu.memory_space<vmem>>, vector<1x4x4xbf16>
    %27 = vector.shape_cast %26 : vector<1x4x4xbf16> to vector<4x4xbf16>
    %c0_26 = arith.constant 0 : index
    %c144 = arith.constant 144 : index
    %28 = vector.load %arg11[%c0_26, %c144] : memref<4x401xbf16, #tpu.memory_space<vmem>>, vector<4x256xbf16>
    %cst_27 = arith.constant dense<0.000000e+00> : vector<4x256xf32>
    %29 = tpu.matmul %27, %28, %cst_27 {dimension_numbers = #tpu.dot_dimension_numbers<[1], [0], [0], [1], [0, 0, 1, 1], [], []>} : vector<4x4xbf16>, vector<4x256xbf16>, vector<4x256xf32> -> vector<4x256xf32>
    %30 = arith.addf %25, %29 : vector<4x256xf32>
    %c0_28 = arith.constant 0 : index
    %c0_29 = arith.constant 0 : index
    %c0_30 = arith.constant 0 : index
    %31 = vector.load %arg6[%c0_28, %c0_29, %c0_30] : memref<9x4x4xbf16, #tpu.memory_space<vmem>>, vector<1x4x4xbf16>
    %32 = vector.shape_cast %31 : vector<1x4x4xbf16> to vector<4x4xbf16>
    %c0_31 = arith.constant 0 : index
    %c111_32 = arith.constant 111 : index
    %33 = vector.load %arg11[%c0_31, %c111_32] : memref<4x401xbf16, #tpu.memory_space<vmem>>, vector<4x256xbf16>
    %cst_33 = arith.constant dense<0.000000e+00> : vector<4x256xf32>
    %34 = tpu.matmul %32, %33, %cst_33 {dimension_numbers = #tpu.dot_dimension_numbers<[1], [0], [0], [1], [0, 0, 1, 1], [], []>} : vector<4x4xbf16>, vector<4x256xbf16>, vector<4x256xf32> -> vector<4x256xf32>
    %c3 = arith.constant 3 : index
    %c0_34 = arith.constant 0 : index
    %c0_35 = arith.constant 0 : index
    %35 = vector.load %arg6[%c3, %c0_34, %c0_35] : memref<9x4x4xbf16, #tpu.memory_space<vmem>>, vector<1x4x4xbf16>
    %36 = vector.shape_cast %35 : vector<1x4x4xbf16> to vector<4x4xbf16>
    %c0_36 = arith.constant 0 : index
    %c127 = arith.constant 127 : index
    %37 = vector.load %arg11[%c0_36, %c127] : memref<4x401xbf16, #tpu.memory_space<vmem>>, vector<4x256xbf16>
    %cst_37 = arith.constant dense<0.000000e+00> : vector<4x256xf32>
    %38 = tpu.matmul %36, %37, %cst_37 {dimension_numbers = #tpu.dot_dimension_numbers<[1], [0], [0], [1], [0, 0, 1, 1], [], []>} : vector<4x4xbf16>, vector<4x256xbf16>, vector<4x256xf32> -> vector<4x256xf32>
    %39 = arith.addf %34, %38 : vector<4x256xf32>
    %c6 = arith.constant 6 : index
    %c0_38 = arith.constant 0 : index
    %c0_39 = arith.constant 0 : index
    %40 = vector.load %arg6[%c6, %c0_38, %c0_39] : memref<9x4x4xbf16, #tpu.memory_space<vmem>>, vector<1x4x4xbf16>
    %41 = vector.shape_cast %40 : vector<1x4x4xbf16> to vector<4x4xbf16>
    %c0_40 = arith.constant 0 : index
    %c143 = arith.constant 143 : index
    %42 = vector.load %arg11[%c0_40, %c143] : memref<4x401xbf16, #tpu.memory_space<vmem>>, vector<4x256xbf16>
    %cst_41 = arith.constant dense<0.000000e+00> : vector<4x256xf32>
    %43 = tpu.matmul %41, %42, %cst_41 {dimension_numbers = #tpu.dot_dimension_numbers<[1], [0], [0], [1], [0, 0, 1, 1], [], []>} : vector<4x4xbf16>, vector<4x256xbf16>, vector<4x256xf32> -> vector<4x256xf32>
    %44 = arith.addf %39, %43 : vector<4x256xf32>
    %c0_42 = arith.constant 0 : index
    %c0_43 = arith.constant 0 : index
    %45 = vector.load %arg3[%c0_42, %c0_43] : memref<2x256xf32, #tpu.memory_space<vmem>>, vector<1x256xf32>
    %46 = vector.broadcast %45 : vector<1x256xf32> to vector<4x256xf32>
    %47 = arith.mulf %44, %46 : vector<4x256xf32>
    %48 = arith.addf %30, %47 : vector<4x256xf32>
    %c2 = arith.constant 2 : index
    %c0_44 = arith.constant 0 : index
    %c0_45 = arith.constant 0 : index
    %49 = vector.load %arg6[%c2, %c0_44, %c0_45] : memref<9x4x4xbf16, #tpu.memory_space<vmem>>, vector<1x4x4xbf16>
    %50 = vector.shape_cast %49 : vector<1x4x4xbf16> to vector<4x4xbf16>
    %c0_46 = arith.constant 0 : index
    %c113 = arith.constant 113 : index
    %51 = vector.load %arg11[%c0_46, %c113] : memref<4x401xbf16, #tpu.memory_space<vmem>>, vector<4x256xbf16>
    %cst_47 = arith.constant dense<0.000000e+00> : vector<4x256xf32>
    %52 = tpu.matmul %50, %51, %cst_47 {dimension_numbers = #tpu.dot_dimension_numbers<[1], [0], [0], [1], [0, 0, 1, 1], [], []>} : vector<4x4xbf16>, vector<4x256xbf16>, vector<4x256xf32> -> vector<4x256xf32>
    %c5 = arith.constant 5 : index
    %c0_48 = arith.constant 0 : index
    %c0_49 = arith.constant 0 : index
    %53 = vector.load %arg6[%c5, %c0_48, %c0_49] : memref<9x4x4xbf16, #tpu.memory_space<vmem>>, vector<1x4x4xbf16>
    %54 = vector.shape_cast %53 : vector<1x4x4xbf16> to vector<4x4xbf16>
    %c0_50 = arith.constant 0 : index
    %c129 = arith.constant 129 : index
    %55 = vector.load %arg11[%c0_50, %c129] : memref<4x401xbf16, #tpu.memory_space<vmem>>, vector<4x256xbf16>
    %cst_51 = arith.constant dense<0.000000e+00> : vector<4x256xf32>
    %56 = tpu.matmul %54, %55, %cst_51 {dimension_numbers = #tpu.dot_dimension_numbers<[1], [0], [0], [1], [0, 0, 1, 1], [], []>} : vector<4x4xbf16>, vector<4x256xbf16>, vector<4x256xf32> -> vector<4x256xf32>
    %57 = arith.addf %52, %56 : vector<4x256xf32>
    %c8 = arith.constant 8 : index
    %c0_52 = arith.constant 0 : index
    %c0_53 = arith.constant 0 : index
    %58 = vector.load %arg6[%c8, %c0_52, %c0_53] : memref<9x4x4xbf16, #tpu.memory_space<vmem>>, vector<1x4x4xbf16>
    %59 = vector.shape_cast %58 : vector<1x4x4xbf16> to vector<4x4xbf16>
    %c0_54 = arith.constant 0 : index
    %c145 = arith.constant 145 : index
    %60 = vector.load %arg11[%c0_54, %c145] : memref<4x401xbf16, #tpu.memory_space<vmem>>, vector<4x256xbf16>
    %cst_55 = arith.constant dense<0.000000e+00> : vector<4x256xf32>
    %61 = tpu.matmul %59, %60, %cst_55 {dimension_numbers = #tpu.dot_dimension_numbers<[1], [0], [0], [1], [0, 0, 1, 1], [], []>} : vector<4x4xbf16>, vector<4x256xbf16>, vector<4x256xf32> -> vector<4x256xf32>
    %62 = arith.addf %57, %61 : vector<4x256xf32>
    %c1_56 = arith.constant 1 : index
    %c0_57 = arith.constant 0 : index
    %63 = vector.load %arg3[%c1_56, %c0_57] : memref<2x256xf32, #tpu.memory_space<vmem>>, vector<1x256xf32>
    %64 = vector.broadcast %63 : vector<1x256xf32> to vector<4x256xf32>
    %65 = arith.mulf %62, %64 : vector<4x256xf32>
    %66 = arith.addf %48, %65 : vector<4x256xf32>
    %c0_58 = arith.constant 0 : index
    %c0_59 = arith.constant 0 : index
    %67 = vector.load %arg7[%c0_58, %c0_59] : memref<4x1xf32, #tpu.memory_space<vmem>>, vector<4x1xf32>
    %68 = vector.broadcast %67 : vector<4x1xf32> to vector<4x256xf32>
    %69 = arith.addf %66, %68 : vector<4x256xf32>
    %cst_60 = arith.constant 0.000000e+00 : f32
    %70 = vector.broadcast %cst_60 : f32 to vector<4x256xf32>
    %71 = arith.maximumf %69, %70 : vector<4x256xf32>
    %72 = arith.truncf %71 : vector<4x256xf32> to vector<4x256xbf16>
    %c0_61 = arith.constant 0 : index
    %c0_62 = arith.constant 0 : index
    %73 = vector.load %arg8[%c0_61, %c0_62] : memref<16x4xbf16, #tpu.memory_space<vmem>>, vector<16x4xbf16>
    %cst_63 = arith.constant dense<0.000000e+00> : vector<16x256xf32>
    %74 = tpu.matmul %73, %72, %cst_63 {dimension_numbers = #tpu.dot_dimension_numbers<[1], [0], [0], [1], [0, 0, 1, 1], [], []>} : vector<16x4xbf16>, vector<4x256xbf16>, vector<16x256xf32> -> vector<16x256xf32>
    %c0_64 = arith.constant 0 : index
    %c0_65 = arith.constant 0 : index
    %75 = vector.load %arg9[%c0_64, %c0_65] : memref<16x1xf32, #tpu.memory_space<vmem>>, vector<16x1xf32>
    %76 = vector.broadcast %75 : vector<16x1xf32> to vector<16x256xf32>
    %77 = arith.addf %74, %76 : vector<16x256xf32>
    %c0_66 = arith.constant 0 : index
    %c0_67 = arith.constant 0 : index
    %c0_68 = arith.constant 0 : index
    %78 = vector.load %arg2[%c0_66, %c0_67, %c0_68] : memref<1x16x256xbf16, #tpu.memory_space<vmem>>, vector<1x16x256xbf16>
    %79 = vector.shape_cast %78 : vector<1x16x256xbf16> to vector<16x256xbf16>
    %80 = arith.extf %79 : vector<16x256xbf16> to vector<16x256xf32>
    %81 = arith.addf %77, %80 : vector<16x256xf32>
    %cst_69 = arith.constant 0.000000e+00 : f32
    %82 = vector.broadcast %cst_69 : f32 to vector<16x256xf32>
    %83 = arith.maximumf %81, %82 : vector<16x256xf32>
    %c0_70 = arith.constant 0 : index
    %c0_71 = arith.constant 0 : index
    %c0_72 = arith.constant 0 : index
    %84 = vector.load %arg10[%c0_70, %c0_71, %c0_72] : memref<1x16x256xf32, #tpu.memory_space<vmem>>, vector<1x16x256xf32>
    %85 = vector.shape_cast %84 : vector<1x16x256xf32> to vector<16x256xf32>
    %86 = vector.shape_cast %83 : vector<16x256xf32> to vector<1x16x256xf32>
    tpu.vector_store %arg10[%c0_70, %c0_71, %c0_72], %86 {strides = array<i32>} : memref<1x16x256xf32, #tpu.memory_space<vmem>>, vector<1x16x256xf32>,
    return
  }
  func.func @transform_0(%arg0: i32, %arg1: i32) -> (i32, i32, i32) {
    %c0_i32 = arith.constant 0 : i32
    %c0_i32_0 = arith.constant 0 : i32
    return %arg0, %c0_i32, %arg1 : i32, i32, i32
  }
  func.func @transform_1(%arg0: i32, %arg1: i32) -> (i32, i32) {
    %c0_i32 = arith.constant 0 : i32
    %c0_i32_0 = arith.constant 0 : i32
    %c0_i32_1 = arith.constant 0 : i32
    return %c0_i32, %c0_i32_0 : i32, i32
  }
  func.func @transform_2(%arg0: i32, %arg1: i32) -> (i32, i32) {
    %c0_i32 = arith.constant 0 : i32
    %c0_i32_0 = arith.constant 0 : i32
    %c0_i32_1 = arith.constant 0 : i32
    return %c0_i32, %c0_i32_0 : i32, i32
  }
  func.func @transform_3(%arg0: i32, %arg1: i32) -> (i32, i32) {
    %c0_i32 = arith.constant 0 : i32
    %c0_i32_0 = arith.constant 0 : i32
    %c0_i32_1 = arith.constant 0 : i32
    return %c0_i32, %c0_i32_0 : i32, i32
  }
  func.func @transform_4(%arg0: i32, %arg1: i32) -> (i32, i32, i32) {
    %c0_i32 = arith.constant 0 : i32
    %c0_i32_0 = arith.constant 0 : i32
    %c0_i32_1 = arith.constant 0 : i32
    %c0_i32_2 = arith.constant 0 : i32
    return %c0_i32, %c0_i32_0, %c0_i32_1 : i32, i32, i32
  }
  func.func @transform_5(%arg0: i32, %arg1: i32) -> (i32, i32) {
    %c0_i32 = arith.constant 0 : i32
    %c0_i32_0 = arith.constant 0 : i32
    %c0_i32_1 = arith.constant 0 : i32
    return %c0_i32, %c0_i32_0 : i32, i32
  }
  func.func @transform_6(%arg0: i32, %arg1: i32) -> (i32, i32) {
    %c0_i32 = arith.constant 0 : i32
    %c0_i32_0 = arith.constant 0 : i32
    %c0_i32_1 = arith.constant 0 : i32
    return %c0_i32, %c0_i32_0 : i32, i32
  }
  func.func @transform_7(%arg0: i32, %arg1: i32) -> (i32, i32) {
    %c0_i32 = arith.constant 0 : i32
    %c0_i32_0 = arith.constant 0 : i32
    %c0_i32_1 = arith.constant 0 : i32
    return %c0_i32, %c0_i32_0 : i32, i32
  }
  func.func @transform_8(%arg0: i32, %arg1: i32) -> (i32, i32, i32) {
    %c0_i32 = arith.constant 0 : i32
    %c0_i32_0 = arith.constant 0 : i32
    return %arg0, %c0_i32, %arg1 : i32, i32, i32
  }
}

</mosaic_0001>

<llo_original>
// kernel: tpu_custom_call.1
$region0: #{tpu_custom_call.1}
  #allocation0 [shape = 'u32[]', space=smem, size = 0x4, offset = 0x4, fixed_abs, tag = 'smem constant byte address 0x4 - core index']
  #allocation1 [shape = 'u32[144,128]{1,0:T(1,128)}', space=vmem, size = 0x12000, scoped, tag = 'internal scratch']
  #allocation2 [shape = 'bf16[4,401]{1,0:T(4,128)(2,1)}', space=vmem, size = 0x1000, scoped, tag = 'scratch operand']
  %s0 = inlined_call_operand.vmem [shape: bf16[2,16,256], index: 0, kind: input, shape index: {}]
  %s1 = inlined_call_operand.vmem [shape: f32[2,256], index: 1, kind: input, shape index: {}]
  %s2 = inlined_call_operand.vmem [shape: bf16[4,16], index: 2, kind: input, shape index: {}]
  %s3 = inlined_call_operand.vmem [shape: f32[4,1], index: 3, kind: input, shape index: {}]
  %s4 = inlined_call_operand.vmem [shape: bf16[9,4,4], index: 4, kind: input, shape index: {}]
  %s5 = inlined_call_operand.vmem [shape: f32[4,1], index: 5, kind: input, shape index: {}]
  %s6 = inlined_call_operand.vmem [shape: bf16[16,4], index: 6, kind: input, shape index: {}]
  %s7 = inlined_call_operand.vmem [shape: f32[16,1], index: 7, kind: input, shape index: {}]
  %s8 = inlined_call_operand.hbm [shape: f32[2,16,256], index: 8, kind: output, shape index: {}]
  %s9 = sld [smem:[#allocation0]]
  $region65: #{tpu_custom_call.1} parent=0
    _
  %s11 = ssub.s32 1, %s9
  %s12 = scalar_select 0, %s11, %s9
  $region1: #{tpu_custom_call.1} parent=0
    #allocation3 [shape = 'u8[32768]{0}', space=vmem, size = 0x8000, scoped, tag = 'output window, operand 0']
    #allocation4 [shape = 's32[2]{0}', space=sflag, size = 0x8, scoped, tag = 'scoped memory for tpu_custom_call.1']
    %13 = vsyncpa [#allocation4], 0
    %s14 = scalar_lea.sflag [#allocation4], 1
    %15 = vsyncpa %s14, 0
    loop: start=0, step=1, limit=4
    $region2: #{tpu_custom_call.1} parent=1 // loop_pre_header
      _
    $region3: #{tpu_custom_call.1} parent=1 // loop_header
      %s17 = sphi 0, %s21
      %p18 = scmp.ge.s32.totalorder %s17, 4
      %s24 = sphi 0, %s36
      %s25 = sphi 0, %s32
      %s26 = sphi 0, %s24
      %s27 = sphi 0, %s25
      %s28 = sphi 0, %s26
      %s29 = sphi 0, %s27
      %s41 = sphi 0, %s43
      %s44 = sphi 0, %s41
      %s45 = sphi 0, %s44
      %s61 = sphi 0, %s45
      %s65 = sphi 0, %s65
      %s67 = sphi 0, %s65
      %s68 = sphi 0, %s67
      %s82 = sphi 0, %s68
      %s86 = sphi 0, %s86
      %s88 = sphi 0, %s86
      %s89 = sphi 0, %s88
      %s103 = sphi 0, %s89
      %s107 = sphi 0, %s107
      %s109 = sphi 0, %s107
      %s110 = sphi 0, %s109
      %s124 = sphi 0, %s110
      %s128 = sphi 0, %s128
      %s130 = sphi 0, %s128
      %s131 = sphi 0, %s130
      %s145 = sphi 0, %s131
      %s149 = sphi 0, %s149
      %s151 = sphi 0, %s149
      %s152 = sphi 0, %s151
      %s166 = sphi 0, %s152
      %s170 = sphi 0, %s170
      %s172 = sphi 0, %s170
      %s173 = sphi 0, %s172
      %s187 = sphi 0, %s173
      %s191 = sphi 0, %s191
      %s193 = sphi 0, %s191
      %s194 = sphi 0, %s193
      %s208 = sphi 0, %s194
      %s216 = sphi 0, %s218
      %s219 = sphi 0, %s216
      %s220 = sphi 0, %s219
      %s236 = sphi 0, %s220
    $region4: #{tpu_custom_call.1} parent=1 // loop_header_branch
      %20 = sbr.rel (%p18) target = $region8
    $region5: #{tpu_custom_call.1} parent=1 // loop_body
      %s22 = ssub.s32 %s17, 1
      %s23 = ssub.s32 %s17, 2
      %s30 = sadd.s32 1, %s25
      %p31 = scmp.ge.s32.totalorder %s30, 1
      %s32 = scalar_select %p31, 0, %s30
      %s33 = sadd.s32 1, %s24
      %s34 = scalar_select %p31, %s33, %s24
      %p35 = scmp.ge.s32.totalorder %s34, 2
      %s36 = scalar_select %p35, 0, %s34
      %s37 = ssub.s32 %s24, %s36
      %s38 = ssub.s32 %s25, %s32
      %s39 = sor.u32 %s37, %s38
      %p40 = scmp.eq.s32.totalorder %s39, 0
      %s42 = sadd.s32 %s41, 1
      %s43 = scalar_select %p40, %s41, %s42
      %p46 = pneg %p40
      %p47 = scmp.eq.s32.totalorder %s17, 1
      %p48 = por %p46, %p47
      %p49 = scmp.ne.s32.totalorder %s41, %s44
      %p50 = scmp.eq.s32.totalorder %s17, 0
      %p51 = por %p49, %p50
      %p52 = scmp.ne.s32.totalorder %s41, %s44
      %p53 = scmp.eq.s32.totalorder %s22, 1
      %p54 = por %p52, %p53
      %p55 = scmp.ne.s32.totalorder %s44, %s45
      %p56 = scmp.eq.s32.totalorder %s22, 0
      %p57 = por %p55, %p56
      %p58 = scmp.ne.s32.totalorder %s44, %s45
      %p59 = scmp.eq.s32.totalorder %s23, 1
      %p60 = por %p58, %p59
      %p62 = scmp.ne.s32.totalorder %s45, %s61
      %p63 = scmp.eq.s32.totalorder %s23, 0
      %p64 = por %p62, %p63
      %s66 = sadd.s32 %s65, 1
      %p69 = scmp.eq.s32.totalorder %s17, 1
      %p70 = scmp.ne.s32.totalorder %s65, %s67
      %p71 = scmp.eq.s32.totalorder %s17, 0
      %p72 = por %p70, %p71
      %p73 = scmp.ne.s32.totalorder %s65, %s67
      %p74 = scmp.eq.s32.totalorder %s22, 1
      %p75 = por %p73, %p74
      %p76 = scmp.ne.s32.totalorder %s67, %s68
      %p77 = scmp.eq.s32.totalorder %s22, 0
      %p78 = por %p76, %p77
      %p79 = scmp.ne.s32.totalorder %s67, %s68
      %p80 = scmp.eq.s32.totalorder %s23, 1
      %p81 = por %p79, %p80
      %p83 = scmp.ne.s32.totalorder %s68, %s82
      %p84 = scmp.eq.s32.totalorder %s23, 0
      %p85 = por %p83, %p84
      %s87 = sadd.s32 %s86, 1
      %p90 = scmp.eq.s32.totalorder %s17, 1
      %p91 = scmp.ne.s32.totalorder %s86, %s88
      %p92 = scmp.eq.s32.totalorder %s17, 0
      %p93 = por %p91, %p92
      %p94 = scmp.ne.s32.totalorder %s86, %s88
      %p95 = scmp.eq.s32.totalorder %s22, 1
      %p96 = por %p94, %p95
      %p97 = scmp.ne.s32.totalorder %s88, %s89
      %p98 = scmp.eq.s32.totalorder %s22, 0
      %p99 = por %p97, %p98
      %p100 = scmp.ne.s32.totalorder %s88, %s89
      %p101 = scmp.eq.s32.totalorder %s23, 1
      %p102 = por %p100, %p101
      %p104 = scmp.ne.s32.totalorder %s89, %s103
      %p105 = scmp.eq.s32.totalorder %s23, 0
      %p106 = por %p104, %p105
      %s108 = sadd.s32 %s107, 1
      %p111 = scmp.eq.s32.totalorder %s17, 1
      %p112 = scmp.ne.s32.totalorder %s107, %s109
      %p113 = scmp.eq.s32.totalorder %s17, 0
      %p114 = por %p112, %p113
      %p115 = scmp.ne.s32.totalorder %s107, %s109
      %p116 = scmp.eq.s32.totalorder %s22, 1
      %p117 = por %p115, %p116
      %p118 = scmp.ne.s32.totalorder %s109, %s110
      %p119 = scmp.eq.s32.totalorder %s22, 0
      %p120 = por %p118, %p119
      %p121 = scmp.ne.s32.totalorder %s109, %s110
      %p122 = scmp.eq.s32.totalorder %s23, 1
      %p123 = por %p121, %p122
      %p125 = scmp.ne.s32.totalorder %s110, %s124
      %p126 = scmp.eq.s32.totalorder %s23, 0
      %p127 = por %p125, %p126
      %s129 = sadd.s32 %s128, 1
      %p132 = scmp.eq.s32.totalorder %s17, 1
      %p133 = scmp.ne.s32.totalorder %s128, %s130
      %p134 = scmp.eq.s32.totalorder %s17, 0
      %p135 = por %p133, %p134
      %p136 = scmp.ne.s32.totalorder %s128, %s130
      %p137 = scmp.eq.s32.totalorder %s22, 1
      %p138 = por %p136, %p137
      %p139 = scmp.ne.s32.totalorder %s130, %s131
      %p140 = scmp.eq.s32.totalorder %s22, 0
      %p141 = por %p139, %p140
      %p142 = scmp.ne.s32.totalorder %s130, %s131
      %p143 = scmp.eq.s32.totalorder %s23, 1
      %p144 = por %p142, %p143
      %p146 = scmp.ne.s32.totalorder %s131, %s145
      %p147 = scmp.eq.s32.totalorder %s23, 0
      %p148 = por %p146, %p147
      %s150 = sadd.s32 %s149, 1
      %p153 = scmp.eq.s32.totalorder %s17, 1
      %p154 = scmp.ne.s32.totalorder %s149, %s151
      %p155 = scmp.eq.s32.totalorder %s17, 0
      %p156 = por %p154, %p155
      %p157 = scmp.ne.s32.totalorder %s149, %s151
      %p158 = scmp.eq.s32.totalorder %s22, 1
      %p159 = por %p157, %p158
      %p160 = scmp.ne.s32.totalorder %s151, %s152
      %p161 = scmp.eq.s32.totalorder %s22, 0
      %p162 = por %p160, %p161
      %p163 = scmp.ne.s32.totalorder %s151, %s152
      %p164 = scmp.eq.s32.totalorder %s23, 1
      %p165 = por %p163, %p164
      %p167 = scmp.ne.s32.totalorder %s152, %s166
      %p168 = scmp.eq.s32.totalorder %s23, 0
      %p169 = por %p167, %p168
      %s171 = sadd.s32 %s170, 1
      %p174 = scmp.eq.s32.totalorder %s17, 1
      %p175 = scmp.ne.s32.totalorder %s170, %s172
      %p176 = scmp.eq.s32.totalorder %s17, 0
      %p177 = por %p175, %p176
      %p178 = scmp.ne.s32.totalorder %s170, %s172
      %p179 = scmp.eq.s32.totalorder %s22, 1
      %p180 = por %p178, %p179
      %p181 = scmp.ne.s32.totalorder %s172, %s173
      %p182 = scmp.eq.s32.totalorder %s22, 0
      %p183 = por %p181, %p182
      %p184 = scmp.ne.s32.totalorder %s172, %s173
      %p185 = scmp.eq.s32.totalorder %s23, 1
      %p186 = por %p184, %p185
      %p188 = scmp.ne.s32.totalorder %s173, %s187
      %p189 = scmp.eq.s32.totalorder %s23, 0
      %p190 = por %p188, %p189
      %s192 = sadd.s32 %s191, 1
      %p195 = scmp.eq.s32.totalorder %s17, 1
      %p196 = scmp.ne.s32.totalorder %s191, %s193
      %p197 = scmp.eq.s32.totalorder %s17, 0
      %p198 = por %p196, %p197
      %p199 = scmp.ne.s32.totalorder %s191, %s193
      %p200 = scmp.eq.s32.totalorder %s22, 1
      %p201 = por %p199, %p200
      %p202 = scmp.ne.s32.totalorder %s193, %s194
      %p203 = scmp.eq.s32.totalorder %s22, 0
      %p204 = por %p202, %p203
      %p205 = scmp.ne.s32.totalorder %s193, %s194
      %p206 = scmp.eq.s32.totalorder %s23, 1
      %p207 = por %p205, %p206
      %p209 = scmp.ne.s32.totalorder %s194, %s208
      %p210 = scmp.eq.s32.totalorder %s23, 0
      %p211 = por %p209, %p210
      %s212 = ssub.s32 %s24, %s36
      %s213 = ssub.s32 %s25, %s32
      %s214 = sor.u32 %s212, %s213
      %p215 = scmp.eq.s32.totalorder %s214, 0
      %s217 = sadd.s32 %s216, 1
      %s218 = scalar_select %p215, %s216, %s217
      %p221 = pneg %p215
      %p222 = scmp.eq.s32.totalorder %s17, 1
      %p223 = por %p221, %p222
      %p224 = scmp.ne.s32.totalorder %s216, %s219
      %p225 = scmp.eq.s32.totalorder %s17, 0
      %p226 = por %p224, %p225
      %p227 = scmp.ne.s32.totalorder %s216, %s219
      %p228 = scmp.eq.s32.totalorder %s22, 1
      %p229 = por %p227, %p228
      %p230 = scmp.ne.s32.totalorder %s219, %s220
      %p231 = scmp.eq.s32.totalorder %s22, 0
      %p232 = por %p230, %p231
      %p233 = scmp.ne.s32.totalorder %s219, %s220
      %p234 = scmp.eq.s32.totalorder %s23, 1
      %p235 = por %p233, %p234
      %p237 = scmp.ne.s32.totalorder %s220, %s236
      %p238 = scmp.eq.s32.totalorder %s23, 0
      %p239 = por %p237, %p238
      %p240 = scmp.le.s32.totalorder 1, %s17
      %p241 = scmp.lt.s32.totalorder %s17, 3
      %p242 = pnand %p240, %p241
      %p243 = pneg %p242
      // Predicated region
      $region9: #{tpu_custom_call.1} parent=5 // pred_check
        _
      $region10: #{tpu_custom_call.1} parent=5 // pred_check_branch
        %245 = sbr.rel (%p242) target = $region12
      $region11: #{tpu_custom_call.1} parent=5 // pred_region
        %s246 = ssub.s32 %s17, 1
        // Predicated region
        $region13: #{tpu_custom_call.1} parent=11 // pred_check
          %p247 = pneg %p78
        $region14: #{tpu_custom_call.1} parent=11 // pred_check_branch
          %249 = sbr.rel (%p247) target = $region16
        $region15: #{tpu_custom_call.1} parent=11 // pred_region
          _
        $region16: #{tpu_custom_call.1} parent=11 // pred_fallthru
          _
        // Predicated region
        $region17: #{tpu_custom_call.1} parent=11 // pred_check
          %p250 = pneg %p99
        $region18: #{tpu_custom_call.1} parent=11 // pred_check_branch
          %252 = sbr.rel (%p250) target = $region20
        $region19: #{tpu_custom_call.1} parent=11 // pred_region
          _
        $region20: #{tpu_custom_call.1} parent=11 // pred_fallthru
          _
        // Predicated region
        $region21: #{tpu_custom_call.1} parent=11 // pred_check
          %p253 = pneg %p120
        $region22: #{tpu_custom_call.1} parent=11 // pred_check_branch
          %255 = sbr.rel (%p253) target = $region24
        $region23: #{tpu_custom_call.1} parent=11 // pred_region
          _
        $region24: #{tpu_custom_call.1} parent=11 // pred_fallthru
          _
        // Predicated region
        $region25: #{tpu_custom_call.1} parent=11 // pred_check
          %p256 = pneg %p141
        $region26: #{tpu_custom_call.1} parent=11 // pred_check_branch
          %258 = sbr.rel (%p256) target = $region28
        $region27: #{tpu_custom_call.1} parent=11 // pred_region
          _
        $region28: #{tpu_custom_call.1} parent=11 // pred_fallthru
          _
        // Predicated region
        $region29: #{tpu_custom_call.1} parent=11 // pred_check
          %p259 = pneg %p162
        $region30: #{tpu_custom_call.1} parent=11 // pred_check_branch
          %261 = sbr.rel (%p259) target = $region32
        $region31: #{tpu_custom_call.1} parent=11 // pred_region
          _
        $region32: #{tpu_custom_call.1} parent=11 // pred_fallthru
          _
        // Predicated region
        $region33: #{tpu_custom_call.1} parent=11 // pred_check
          %p262 = pneg %p183
        $region34: #{tpu_custom_call.1} parent=11 // pred_check_branch
          %264 = sbr.rel (%p262) target = $region36
        $region35: #{tpu_custom_call.1} parent=11 // pred_region
          _
        $region36: #{tpu_custom_call.1} parent=11 // pred_fallthru
          _
        // Predicated region
        $region37: #{tpu_custom_call.1} parent=11 // pred_check
          %p265 = pneg %p204
        $region38: #{tpu_custom_call.1} parent=11 // pred_check_branch
          %267 = sbr.rel (%p265) target = $region40
        $region39: #{tpu_custom_call.1} parent=11 // pred_region
          _
        $region40: #{tpu_custom_call.1} parent=11 // pred_fallthru
          _
      $region12: #{tpu_custom_call.1} parent=5 // pred_fallthru
        _
      %p268 = scmp.lt.s32.totalorder %s17, 2
      // Predicated region
      $region41: #{tpu_custom_call.1} parent=5 // pred_check
        %p269 = pneg %p268
      $region42: #{tpu_custom_call.1} parent=5 // pred_check_branch
        %271 = sbr.rel (%p269) target = $region44
      $region43: #{tpu_custom_call.1} parent=5 // pred_region
        // Predicated region
        $region45: #{tpu_custom_call.1} parent=43 // pred_check
          %p272 = pneg %p51
        $region46: #{tpu_custom_call.1} parent=43 // pred_check_branch
          %274 = sbr.rel (%p272) target = $region48
        $region47: #{tpu_custom_call.1} parent=43 // pred_region
          %s275 = smul.u32 2, %s25
          %p276 = scmp.lt.s32.totalorder %s24, 1
          %s277 = scalar_select %p276, %s24, 1
          %p278 = scmp.lt.s32.totalorder %s275, 1
          %s279 = scalar_select %p278, %s275, 1
          %s280 = smul.addr %s277, 4
          %s281 = sadd.s32 %s279, %s280
          %s282 = smul.addr %s281, 4
          %s283 = scalar_lea.vmem %s0, %s282
          %s284 = smul.u32 2, %s25
        $region48: #{tpu_custom_call.1} parent=43 // pred_fallthru
          _
      $region44: #{tpu_custom_call.1} parent=5 // pred_fallthru
        _
      %p285 = scmp.le.s32.totalorder 1, %s17
      %p286 = scmp.lt.s32.totalorder %s17, 3
      %p287 = pnand %p285, %p286
      %p288 = pneg %p287
      // Predicated region
      $region49: #{tpu_custom_call.1} parent=5 // pred_check
        _
      $region50: #{tpu_custom_call.1} parent=5 // pred_check_branch
        %290 = sbr.rel (%p287) target = $region52
      $region51: #{tpu_custom_call.1} parent=5 // pred_region
        %s291 = ssub.s32 %s17, 1
        %s292 = smul.u32 2, %s27
        %p293 = scmp.lt.s32.totalorder %s26, 1
        %s294 = scalar_select %p293, %s26, 1
        %p295 = scmp.lt.s32.totalorder %s292, 1
        %s296 = scalar_select %p295, %s292, 1
        %s297 = smul.addr %s294, 4
        %s298 = sadd.s32 %s296, %s297
        %s299 = smul.addr %s298, 4
        %s300 = scalar_lea.vmem %s0, %s299
        %p301 = pneg %p57
        %p302 = pneg %p54
        %p303 = pneg %p78
        %p304 = pneg %p75
        %p305 = pneg %p99
        %p306 = pneg %p96
        %p307 = pneg %p120
        %p308 = pneg %p117
        %p309 = pneg %p141
        %p310 = pneg %p138
        %p311 = pneg %p162
        %p312 = pneg %p159
        %p313 = pneg %p183
        %p314 = pneg %p180
        %p315 = pneg %p204
        %p316 = pneg %p201
        %p317 = pneg %p232
        %p318 = pneg %p229
        %s319 = sand.u32 %s219, 1
        %s320 = scalar_lea.sflag [#allocation4], %s319
        %s321 = sand.u32 %s219, 1
        %s322 = smul.addr %s321, 32
        %s323 = scalar_lea.vmem [#allocation3], %s322
        %s324 = smul.u32 2, %s27
        %p325 = scmp.lt.s32.totalorder %s26, 1
        %s326 = scalar_select %p325, %s26, 1
        %p327 = scmp.lt.s32.totalorder %s324, 1
        %s328 = scalar_select %p327, %s324, 1
        %s329 = smul.addr %s326, 4
        %s330 = sadd.s32 %s328, %s329
        %s331 = smul.addr %s330, 4
        %s332 = scalar_lea.vmem %s0, %s331
        %s333 = smul.u32 2, %s27
        %s334 = smul.u32 2, %s27
        %v336 = vld [vmem:[%s332] sm:$0xff]
        %v337 = vld [vmem:[%s332 + $0x8] sm:$0xff]
        %v338 = vld [vmem:[%s2] sm:$0x3]
        %v339 = vld [vmem:[%s3] sm:$0xf]
        %341 = vset.pattern.permute.xlu0 0
        %342 = vperm.xlu0 %341, %v339
        %v343 = vpop.permute.xlu0 %342
        %v347 = vunpack.c.l.b16 %v336
        %v348 = vunpack.c.h.b16 %v336
        %v349 = vunpack.c.l.b16 %v337
        %v350 = vunpack.c.h.b16 %v337
        %v351 = vpack.c.b16 %v349, %v347
        %v352 = vpack.c.b16 %v350, %v348
        %vm355 = vcmask 130048
        %v357 = vsel %vm355, %v338, 0
        %359 = vmatprep.subr.bf16.mxu0 %v352
        %360 = vmatpush1.bf16.msra.mxu0 %v351
        %361 = vmatprep.subr.bf16.mxu0 0
        %362 = vmatpush1.bf16.msra.mxu0 0
        %363 = vmatprep.subr.bf16.mxu0 0
        %364 = vmatpush1.bf16.msra.mxu0 0
        %365 = vmatprep.subr.bf16.mxu0 0
        %366 = vmatpush1.bf16.msra.mxu0 0
        %367 = vmatprep.subr.bf16.mxu0 0
        %368 = vmatpush1.bf16.msra.mxu0 0
        %369 = vmatprep.subr.bf16.mxu0 0
        %370 = vmatpush1.bf16.msra.mxu0 0
        %371 = vmatprep.subr.bf16.mxu0 0
        %372 = vmatpush1.bf16.msra.mxu0 0
        %373 = vmatprep.subr.bf16.mxu0 0
        %374 = vmatpush1.bf16.msra.mxu0 0
        %375 = vmatprep.subr.bf16.mxu0 0
        %376 = vmatpush1.bf16.msra.mxu0 0
        %377 = vmatprep.subr.bf16.mxu0 0
        %378 = vmatpush1.bf16.msra.mxu0 0
        %379 = vmatprep.subr.bf16.mxu0 0
        %380 = vmatpush1.bf16.msra.mxu0 0
        %381 = vmatprep.subr.bf16.mxu0 0
        %382 = vmatpush1.bf16.msra.mxu0 0
        %383 = vmatprep.subr.bf16.mxu0 0
        %384 = vmatpush1.bf16.msra.mxu0 0
        %385 = vmatprep.subr.bf16.mxu0 0
        %386 = vmatpush1.bf16.msra.mxu0 0
        %387 = vmatprep.subr.bf16.mxu0 0
        %388 = vmatpush1.bf16.msra.mxu0 0
        %389 = vmatprep.subr.bf16.mxu0 0
        %390 = vmatpush1.bf16.msra.mxu0 0
        %391 = vmatprep.mubr.bf16.mxu0 0
        %392 = vmatmul.mubr.bf16.gmra.mrb[0].mxu0 %v357
        %v393 = vpop.f32.mrb[0].mxu0
        %v394 = vadd.f32 %v343, %v393
        %v395 = vpop.f32.mrb[0].mxu0
        %v396 = vadd.f32 %v343, %v395
        %v397 = vpop.f32.mrb[0].mxu0
        %v398 = vpop.f32.mrb[0].mxu0
        %399 = vdwg.mxu0
        %v400 = vmax.f32 %v394, 0.0
        %v401 = vmax.f32 %v396, 0.0
        %v402 = vpack.c.bf16 %v400, %v400
        %v403 = vpack.c.bf16 %v401, %v401
        %v406 = vcombine.low %v402, %v403
        %v408 = vunpack.c.l.s4 1983009808
        %v409 = vunpack.c.0.s8 %v408
        %v410 = vlaneseq
        %v411 = vshrl.u32 %v410, 7
        %v412 = vsub.s32 %v409, %v411
        %v413 = vrot.slane %v406, %v412
        %415 = vst [vmem:[#allocation2 + $0x2] sm:$0xf] %v413
        %vm416 = vcmask 911224
        %417 = vst.msk [vmem:[#allocation2] sm:$0x3] %vm416, 0
        %vm418 = vcmask 132224
        %419 = vst.msk [vmem:[#allocation2 + $0x6] sm:$0x3] %vm418, 0
        %vm420 = vcmask 1042304
        %421 = vst.msk [vmem:[#allocation2] sm:$0x3] %vm420, 0
        %vm422 = vcmask 123904
        %423 = vst.msk [vmem:[#allocation2 + $0x6] sm:$0x3] %vm422, 0
        %s424 = scalar_lea.vmem %s4, 2
        %v425 = vld [vmem:[%s424] sm:$0x3]
        %v426 = vld [vmem:[#allocation2] sm:$0x3f]
        %s427 = scalar_lea.vmem %s4, 8
        %v428 = vld [vmem:[%s427] sm:$0x3]
        %v429 = vld [vmem:[#allocation2 + $0x2] sm:$0xf]
        %v432 = vunpack.c.l.s4 1983009808
        %v433 = vunpack.c.0.s8 %v432
        %v434 = vlaneseq
        %v435 = vshrl.u32 %v434, 7
        %v436 = vsub.s32 %v433, %v435
        %v437 = vrot.slane %v429, %v436
        %v438 = vcombine.high %v437, %v437
        %vm439 = vcmask 31744
        %v441 = vsel %vm439, %v428, 0
        %vm443 = vcmask 1041408
        %v445 = vsel %vm443, %v437, 0
        %v448 = vsel %vm443, %v438, 0
        %450 = vmatprep.subr.bf16.mxu0 %v448
        %451 = vmatpush1.bf16.msra.mxu0 %v445
        %452 = vmatprep.subr.bf16.mxu0 0
        %453 = vmatpush1.bf16.msra.mxu0 0
        %454 = vmatprep.subr.bf16.mxu0 0
        %455 = vmatpush1.bf16.msra.mxu0 0
        %456 = vmatprep.subr.bf16.mxu0 0
        %457 = vmatpush1.bf16.msra.mxu0 0
        %458 = vmatprep.subr.bf16.mxu0 0
        %459 = vmatpush1.bf16.msra.mxu0 0
        %460 = vmatprep.subr.bf16.mxu0 0
        %461 = vmatpush1.bf16.msra.mxu0 0
        %462 = vmatprep.subr.bf16.mxu0 0
        %463 = vmatpush1.bf16.msra.mxu0 0
        %464 = vmatprep.subr.bf16.mxu0 0
        %465 = vmatpush1.bf16.msra.mxu0 0
        %466 = vmatprep.subr.bf16.mxu0 0
        %467 = vmatpush1.bf16.msra.mxu0 0
        %468 = vmatprep.subr.bf16.mxu0 0
        %469 = vmatpush1.bf16.msra.mxu0 0
        %470 = vmatprep.subr.bf16.mxu0 0
        %471 = vmatpush1.bf16.msra.mxu0 0
        %472 = vmatprep.subr.bf16.mxu0 0
        %473 = vmatpush1.bf16.msra.mxu0 0
        %474 = vmatprep.subr.bf16.mxu0 0
        %475 = vmatpush1.bf16.msra.mxu0 0
        %476 = vmatprep.subr.bf16.mxu0 0
        %477 = vmatpush1.bf16.msra.mxu0 0
        %478 = vmatprep.subr.bf16.mxu0 0
        %479 = vmatpush1.bf16.msra.mxu0 0
        %480 = vmatprep.subr.bf16.mxu0 0
        %481 = vmatpush1.bf16.msra.mxu0 0
        %482 = vmatprep.mubr.bf16.mxu0 0
        %483 = vmatmul.mubr.bf16.gmra.mrb[0].mxu0 %v441
        %v484 = vpop.f32.mrb[0].mxu0
        %v485 = vadd.f32 0.0, %v484
        %v486 = vpop.f32.mrb[0].mxu0
        %v487 = vadd.f32 0.0, %v486
        %v488 = vpop.f32.mrb[0].mxu0
        %v489 = vpop.f32.mrb[0].mxu0
        %490 = vdwg.mxu0
        %v492 = vcombine.high %v426, %v426
        %v494 = vunpack.c.l.s4 1983009808
        %v495 = vunpack.c.0.s8 %v494
        %v496 = vlaneseq
        %v497 = vshrl.u32 %v496, 7
        %v498 = vsub.s32 %v495, %v497
        %v499 = vrot.slane %v426, %v498
        %v501 = vunpack.c.l.s4 1983009808
        %v502 = vunpack.c.0.s8 %v501
        %v503 = vlaneseq
        %v504 = vshrl.u32 %v503, 7
        %v505 = vsub.s32 %v502, %v504
        %v506 = vrot.slane %v492, %v505
        %v507 = vcombine.high %v499, %v499
        %508 = vrot.lane.b32.xlu0 %v499, 16
        %v509 = vpop.permute.xlu0 %508
        %510 = vrot.lane.b32.xlu0 %v507, 16
        %v511 = vpop.permute.xlu0 %510
        %512 = vrot.lane.b32.xlu0 %v506, 16
        %v513 = vpop.permute.xlu0 %512
        %vm514 = vcmask 130048
        %v515 = vsel %vm514, %v509, %v511
        %v516 = vsel %vm514, %v511, %v513
        %v518 = vsel %vm439, %v425, 0
        %v521 = vsel %vm443, %v515, 0
        %v524 = vsel %vm443, %v516, 0
        %526 = vmatprep.subr.bf16.mxu0 %v524
        %527 = vmatpush1.bf16.msra.mxu0 %v521
        %528 = vmatprep.subr.bf16.mxu0 0
        %529 = vmatpush1.bf16.msra.mxu0 0
        %530 = vmatprep.subr.bf16.mxu0 0
        %531 = vmatpush1.bf16.msra.mxu0 0
        %532 = vmatprep.subr.bf16.mxu0 0
        %533 = vmatpush1.bf16.msra.mxu0 0
        %534 = vmatprep.subr.bf16.mxu0 0
        %535 = vmatpush1.bf16.msra.mxu0 0
        %536 = vmatprep.subr.bf16.mxu0 0
        %537 = vmatpush1.bf16.msra.mxu0 0
        %538 = vmatprep.subr.bf16.mxu0 0
        %539 = vmatpush1.bf16.msra.mxu0 0
        %540 = vmatprep.subr.bf16.mxu0 0
        %541 = vmatpush1.bf16.msra.mxu0 0
        %542 = vmatprep.subr.bf16.mxu0 0
        %543 = vmatpush1.bf16.msra.mxu0 0
        %544 = vmatprep.subr.bf16.mxu0 0
        %545 = vmatpush1.bf16.msra.mxu0 0
        %546 = vmatprep.subr.bf16.mxu0 0
        %547 = vmatpush1.bf16.msra.mxu0 0
        %548 = vmatprep.subr.bf16.mxu0 0
        %549 = vmatpush1.bf16.msra.mxu0 0
        %550 = vmatprep.subr.bf16.mxu0 0
        %551 = vmatpush1.bf16.msra.mxu0 0
        %552 = vmatprep.subr.bf16.mxu0 0
        %553 = vmatpush1.bf16.msra.mxu0 0
        %554 = vmatprep.subr.bf16.mxu0 0
        %555 = vmatpush1.bf16.msra.mxu0 0
        %556 = vmatprep.subr.bf16.mxu0 0
        %557 = vmatpush1.bf16.msra.mxu0 0
        %558 = vmatprep.mubr.bf16.mxu0 0
        %559 = vmatmul.mubr.bf16.gmra.mrb[0].mxu0 %v518
        %v560 = vpop.f32.mrb[0].mxu0
        %v561 = vadd.f32 %v485, %v560
        %v562 = vpop.f32.mrb[0].mxu0
        %v563 = vadd.f32 %v487, %v562
        %v564 = vpop.f32.mrb[0].mxu0
        %v565 = vpop.f32.mrb[0].mxu0
        %566 = vdwg.mxu0
        %s567 = scalar_lea.vmem %s4, 14
        %v568 = vld [vmem:[%s567] sm:$0x3]
        %v569 = vld [vmem:[#allocation2 + $0x2] sm:$0x3f]
        %v571 = vcombine.high %v569, %v569
        %v573 = vunpack.c.l.s4 1983009808
        %v574 = vunpack.c.0.s8 %v573
        %v575 = vlaneseq
        %v576 = vshrl.u32 %v575, 7
        %v577 = vsub.s32 %v574, %v576
        %v578 = vrot.slane %v569, %v577
        %v580 = vunpack.c.l.s4 1983009808
        %v581 = vunpack.c.0.s8 %v580
        %v582 = vlaneseq
        %v583 = vshrl.u32 %v582, 7
        %v584 = vsub.s32 %v581, %v583
        %v585 = vrot.slane %v571, %v584
        %v586 = vcombine.high %v578, %v578
        %587 = vrot.lane.b32.xlu0 %v578, 112
        %v588 = vpop.permute.xlu0 %587
        %589 = vrot.lane.b32.xlu0 %v586, 112
        %v590 = vpop.permute.xlu0 %589
        %591 = vrot.lane.b32.xlu0 %v585, 112
        %v592 = vpop.permute.xlu0 %591
        %vm593 = vcmask 916480
        %v594 = vsel %vm593, %v588, %v590
        %v595 = vsel %vm593, %v590, %v592
        %v597 = vsel %vm439, %v568, 0
        %v600 = vsel %vm443, %v594, 0
        %v603 = vsel %vm443, %v595, 0
        %605 = vmatprep.subr.bf16.mxu0 %v603
        %606 = vmatpush1.bf16.msra.mxu0 %v600
        %607 = vmatprep.subr.bf16.mxu0 0
        %608 = vmatpush1.bf16.msra.mxu0 0
        %609 = vmatprep.subr.bf16.mxu0 0
        %610 = vmatpush1.bf16.msra.mxu0 0
        %611 = vmatprep.subr.bf16.mxu0 0
        %612 = vmatpush1.bf16.msra.mxu0 0
        %613 = vmatprep.subr.bf16.mxu0 0
        %614 = vmatpush1.bf16.msra.mxu0 0
        %615 = vmatprep.subr.bf16.mxu0 0
        %616 = vmatpush1.bf16.msra.mxu0 0
        %617 = vmatprep.subr.bf16.mxu0 0
        %618 = vmatpush1.bf16.msra.mxu0 0
        %619 = vmatprep.subr.bf16.mxu0 0
        %620 = vmatpush1.bf16.msra.mxu0 0
        %621 = vmatprep.subr.bf16.mxu0 0
        %622 = vmatpush1.bf16.msra.mxu0 0
        %623 = vmatprep.subr.bf16.mxu0 0
        %624 = vmatpush1.bf16.msra.mxu0 0
        %625 = vmatprep.subr.bf16.mxu0 0
        %626 = vmatpush1.bf16.msra.mxu0 0
        %627 = vmatprep.subr.bf16.mxu0 0
        %628 = vmatpush1.bf16.msra.mxu0 0
        %629 = vmatprep.subr.bf16.mxu0 0
        %630 = vmatpush1.bf16.msra.mxu0 0
        %631 = vmatprep.subr.bf16.mxu0 0
        %632 = vmatpush1.bf16.msra.mxu0 0
        %633 = vmatprep.subr.bf16.mxu0 0
        %634 = vmatpush1.bf16.msra.mxu0 0
        %635 = vmatprep.subr.bf16.mxu0 0
        %636 = vmatpush1.bf16.msra.mxu0 0
        %637 = vmatprep.mubr.bf16.mxu0 0
        %638 = vmatmul.mubr.bf16.gmra.mrb[0].mxu0 %v597
        %v639 = vpop.f32.mrb[0].mxu0
        %v640 = vadd.f32 0.0, %v639
        %v641 = vpop.f32.mrb[0].mxu0
        %v642 = vadd.f32 0.0, %v641
        %v643 = vpop.f32.mrb[0].mxu0
        %v644 = vpop.f32.mrb[0].mxu0
        %645 = vdwg.mxu0
        %v646 = vadd.f32 %v561, %v640
        %v647 = vadd.f32 %v563, %v642
        %v648 = vld [vmem:[%s4] sm:$0x3]
        %v649 = vld [vmem:[#allocation2] sm:$0x3f]
        %s650 = scalar_lea.vmem %s4, 6
        %v651 = vld [vmem:[%s650] sm:$0x3]
        %v653 = vcombine.high %v649, %v649
        %v655 = vunpack.c.l.s4 1983009808
        %v656 = vunpack.c.0.s8 %v655
        %v657 = vlaneseq
        %v658 = vshrl.u32 %v657, 7
        %v659 = vsub.s32 %v656, %v658
        %v660 = vrot.slane %v649, %v659
        %v662 = vunpack.c.l.s4 1983009808
        %v663 = vunpack.c.0.s8 %v662
        %v664 = vlaneseq
        %v665 = vshrl.u32 %v664, 7
        %v666 = vsub.s32 %v663, %v665
        %v667 = vrot.slane %v653, %v666
        %v668 = vcombine.high %v660, %v660
        %669 = vrot.lane.b32.xlu0 %v660, 1
        %v670 = vpop.permute.xlu0 %669
        %671 = vrot.lane.b32.xlu0 %v668, 1
        %v672 = vpop.permute.xlu0 %671
        %673 = vrot.lane.b32.xlu0 %v667, 1
        %v674 = vpop.permute.xlu0 %673
        %vm675 = vcmask 7168
        %v676 = vsel %vm675, %v670, %v672
        %v677 = vsel %vm675, %v672, %v674
        %v679 = vsel %vm439, %v651, 0
        %v682 = vsel %vm443, %v676, 0
        %v685 = vsel %vm443, %v677, 0
        %687 = vmatprep.subr.bf16.mxu0 %v685
        %688 = vmatpush1.bf16.msra.mxu0 %v682
        %689 = vmatprep.subr.bf16.mxu0 0
        %690 = vmatpush1.bf16.msra.mxu0 0
        %691 = vmatprep.subr.bf16.mxu0 0
        %692 = vmatpush1.bf16.msra.mxu0 0
        %693 = vmatprep.subr.bf16.mxu0 0
        %694 = vmatpush1.bf16.msra.mxu0 0
        %695 = vmatprep.subr.bf16.mxu0 0
        %696 = vmatpush1.bf16.msra.mxu0 0
        %697 = vmatprep.subr.bf16.mxu0 0
        %698 = vmatpush1.bf16.msra.mxu0 0
        %699 = vmatprep.subr.bf16.mxu0 0
        %700 = vmatpush1.bf16.msra.mxu0 0
        %701 = vmatprep.subr.bf16.mxu0 0
        %702 = vmatpush1.bf16.msra.mxu0 0
        %703 = vmatprep.subr.bf16.mxu0 0
        %704 = vmatpush1.bf16.msra.mxu0 0
        %705 = vmatprep.subr.bf16.mxu0 0
        %706 = vmatpush1.bf16.msra.mxu0 0
        %707 = vmatprep.subr.bf16.mxu0 0
        %708 = vmatpush1.bf16.msra.mxu0 0
        %709 = vmatprep.subr.bf16.mxu0 0
        %710 = vmatpush1.bf16.msra.mxu0 0
        %711 = vmatprep.subr.bf16.mxu0 0
        %712 = vmatpush1.bf16.msra.mxu0 0
        %713 = vmatprep.subr.bf16.mxu0 0
        %714 = vmatpush1.bf16.msra.mxu0 0
        %715 = vmatprep.subr.bf16.mxu0 0
        %716 = vmatpush1.bf16.msra.mxu0 0
        %717 = vmatprep.subr.bf16.mxu0 0
        %718 = vmatpush1.bf16.msra.mxu0 0
        %719 = vmatprep.mubr.bf16.mxu0 0
        %720 = vmatmul.mubr.bf16.gmra.mrb[0].mxu0 %v679
        %v721 = vpop.f32.mrb[0].mxu0
        %v722 = vadd.f32 0.0, %v721
        %v723 = vpop.f32.mrb[0].mxu0
        %v724 = vadd.f32 0.0, %v723
        %v725 = vpop.f32.mrb[0].mxu0
        %v726 = vpop.f32.mrb[0].mxu0
        %727 = vdwg.mxu0
        %728 = vrot.lane.b32.xlu0 %v660, 17
        %v729 = vpop.permute.xlu0 %728
        %730 = vrot.lane.b32.xlu0 %v668, 17
        %v731 = vpop.permute.xlu0 %730
        %732 = vrot.lane.b32.xlu0 %v667, 17
        %v733 = vpop.permute.xlu0 %732
        %vm734 = vcmask 138240
        %v735 = vsel %vm734, %v729, %v731
        %v736 = vsel %vm734, %v731, %v733
        %v738 = vsel %vm439, %v648, 0
        %v741 = vsel %vm443, %v735, 0
        %v744 = vsel %vm443, %v736, 0
        %746 = vmatprep.subr.bf16.mxu0 %v744
        %747 = vmatpush1.bf16.msra.mxu0 %v741
        %748 = vmatprep.subr.bf16.mxu0 0
        %749 = vmatpush1.bf16.msra.mxu0 0
        %750 = vmatprep.subr.bf16.mxu0 0
        %751 = vmatpush1.bf16.msra.mxu0 0
        %752 = vmatprep.subr.bf16.mxu0 0
        %753 = vmatpush1.bf16.msra.mxu0 0
        %754 = vmatprep.subr.bf16.mxu0 0
        %755 = vmatpush1.bf16.msra.mxu0 0
        %756 = vmatprep.subr.bf16.mxu0 0
        %757 = vmatpush1.bf16.msra.mxu0 0
        %758 = vmatprep.subr.bf16.mxu0 0
        %759 = vmatpush1.bf16.msra.mxu0 0
        %760 = vmatprep.subr.bf16.mxu0 0
        %761 = vmatpush1.bf16.msra.mxu0 0
        %762 = vmatprep.subr.bf16.mxu0 0
        %763 = vmatpush1.bf16.msra.mxu0 0
        %764 = vmatprep.subr.bf16.mxu0 0
        %765 = vmatpush1.bf16.msra.mxu0 0
        %766 = vmatprep.subr.bf16.mxu0 0
        %767 = vmatpush1.bf16.msra.mxu0 0
        %768 = vmatprep.subr.bf16.mxu0 0
        %769 = vmatpush1.bf16.msra.mxu0 0
        %770 = vmatprep.subr.bf16.mxu0 0
        %771 = vmatpush1.bf16.msra.mxu0 0
        %772 = vmatprep.subr.bf16.mxu0 0
        %773 = vmatpush1.bf16.msra.mxu0 0
        %774 = vmatprep.subr.bf16.mxu0 0
        %775 = vmatpush1.bf16.msra.mxu0 0
        %776 = vmatprep.subr.bf16.mxu0 0
        %777 = vmatpush1.bf16.msra.mxu0 0
        %778 = vmatprep.mubr.bf16.mxu0 0
        %779 = vmatmul.mubr.bf16.gmra.mrb[0].mxu0 %v738
        %v780 = vpop.f32.mrb[0].mxu0
        %v781 = vadd.f32 %v722, %v780
        %v782 = vpop.f32.mrb[0].mxu0
        %v783 = vadd.f32 %v724, %v782
        %v784 = vpop.f32.mrb[0].mxu0
        %v785 = vpop.f32.mrb[0].mxu0
        %786 = vdwg.mxu0
        %s787 = scalar_lea.vmem %s4, 12
        %v788 = vld [vmem:[%s787] sm:$0x3]
        %v789 = vld [vmem:[#allocation2 + $0x2] sm:$0x3f]
        %v791 = vcombine.high %v789, %v789
        %v793 = vunpack.c.l.s4 1983009808
        %v794 = vunpack.c.0.s8 %v793
        %v795 = vlaneseq
        %v796 = vshrl.u32 %v795, 7
        %v797 = vsub.s32 %v794, %v796
        %v798 = vrot.slane %v789, %v797
        %v800 = vunpack.c.l.s4 1983009808
        %v801 = vunpack.c.0.s8 %v800
        %v802 = vlaneseq
        %v803 = vshrl.u32 %v802, 7
        %v804 = vsub.s32 %v801, %v803
        %v805 = vrot.slane %v791, %v804
        %v806 = vcombine.high %v798, %v798
        %807 = vrot.lane.b32.xlu0 %v798, 113
        %v808 = vpop.permute.xlu0 %807
        %809 = vrot.lane.b32.xlu0 %v806, 113
        %v810 = vpop.permute.xlu0 %809
        %811 = vrot.lane.b32.xlu0 %v805, 113
        %v812 = vpop.permute.xlu0 %811
        %vm813 = vcmask 924672
        %v814 = vsel %vm813, %v808, %v810
        %v815 = vsel %vm813, %v810, %v812
        %v817 = vsel %vm439, %v788, 0
        %v820 = vsel %vm443, %v814, 0
        %v823 = vsel %vm443, %v815, 0
        %825 = vmatprep.subr.bf16.mxu0 %v823
        %826 = vmatpush1.bf16.msra.mxu0 %v820
        %827 = vmatprep.subr.bf16.mxu0 0
        %828 = vmatpush1.bf16.msra.mxu0 0
        %829 = vmatprep.subr.bf16.mxu0 0
        %830 = vmatpush1.bf16.msra.mxu0 0
        %831 = vmatprep.subr.bf16.mxu0 0
        %832 = vmatpush1.bf16.msra.mxu0 0
        %833 = vmatprep.subr.bf16.mxu0 0
        %834 = vmatpush1.bf16.msra.mxu0 0
        %835 = vmatprep.subr.bf16.mxu0 0
        %836 = vmatpush1.bf16.msra.mxu0 0
        %837 = vmatprep.subr.bf16.mxu0 0
        %838 = vmatpush1.bf16.msra.mxu0 0
        %839 = vmatprep.subr.bf16.mxu0 0
        %840 = vmatpush1.bf16.msra.mxu0 0
        %841 = vmatprep.subr.bf16.mxu0 0
        %842 = vmatpush1.bf16.msra.mxu0 0
        %843 = vmatprep.subr.bf16.mxu0 0
        %844 = vmatpush1.bf16.msra.mxu0 0
        %845 = vmatprep.subr.bf16.mxu0 0
        %846 = vmatpush1.bf16.msra.mxu0 0
        %847 = vmatprep.subr.bf16.mxu0 0
        %848 = vmatpush1.bf16.msra.mxu0 0
        %849 = vmatprep.subr.bf16.mxu0 0
        %850 = vmatpush1.bf16.msra.mxu0 0
        %851 = vmatprep.subr.bf16.mxu0 0
        %852 = vmatpush1.bf16.msra.mxu0 0
        %853 = vmatprep.subr.bf16.mxu0 0
        %854 = vmatpush1.bf16.msra.mxu0 0
        %855 = vmatprep.subr.bf16.mxu0 0
        %856 = vmatpush1.bf16.msra.mxu0 0
        %857 = vmatprep.mubr.bf16.mxu0 0
        %858 = vmatmul.mubr.bf16.gmra.mrb[0].mxu0 %v817
        %v859 = vpop.f32.mrb[0].mxu0
        %v860 = vadd.f32 0.0, %v859
        %v861 = vpop.f32.mrb[0].mxu0
        %v862 = vadd.f32 0.0, %v861
        %v863 = vpop.f32.mrb[0].mxu0
        %v864 = vpop.f32.mrb[0].mxu0
        %865 = vdwg.mxu0
        %v866 = vadd.f32 %v781, %v860
        %v867 = vadd.f32 %v783, %v862
        %v868 = vld [vmem:[%s1] ss:$2 sm:$0x3]
        %v870 = vlaneseq
        %v871 = vshrl.u32 %v870, 7
        %v872 = vsub.s32 0, %v871
        %v873 = vrot.slane %v868, %v872
        %v874 = vlaneseq
        %v875 = vshrl.u32 %v874, 7
        %v876 = vsub.s32 1, %v875
        %v877 = vrot.slane %v868, %v876
        %v880 = vmul.f32 %v866, %v873
        %v881 = vmul.f32 %v867, %v877
        %v882 = vadd.f32 %v646, %v880
        %v883 = vadd.f32 %v647, %v881
        %s884 = scalar_lea.vmem %s4, 4
        %v885 = vld [vmem:[%s884] sm:$0x3]
        %v886 = vld [vmem:[#allocation2] sm:$0x3f]
        %s887 = scalar_lea.vmem %s4, 10
        %v888 = vld [vmem:[%s887] sm:$0x3]
        %v889 = vld [vmem:[#allocation2 + $0x2] sm:$0x3f]
        %v891 = vcombine.high %v889, %v889
        %v893 = vunpack.c.l.s4 1983009808
        %v894 = vunpack.c.0.s8 %v893
        %v895 = vlaneseq
        %v896 = vshrl.u32 %v895, 7
        %v897 = vsub.s32 %v894, %v896
        %v898 = vrot.slane %v889, %v897
        %v900 = vunpack.c.l.s4 1983009808
        %v901 = vunpack.c.0.s8 %v900
        %v902 = vlaneseq
        %v903 = vshrl.u32 %v902, 7
        %v904 = vsub.s32 %v901, %v903
        %v905 = vrot.slane %v891, %v904
        %v906 = vcombine.high %v898, %v898
        %907 = vrot.lane.b32.xlu0 %v898, 127
        %v908 = vpop.permute.xlu0 %907
        %909 = vrot.lane.b32.xlu0 %v906, 127
        %v910 = vpop.permute.xlu0 %909
        %911 = vrot.lane.b32.xlu0 %v905, 127
        %v912 = vpop.permute.xlu0 %911
        %vm913 = vcmask 1039360
        %v914 = vsel %vm913, %v908, %v910
        %v915 = vsel %vm913, %v910, %v912
        %v917 = vsel %vm439, %v888, 0
        %v920 = vsel %vm443, %v914, 0
        %v923 = vsel %vm443, %v915, 0
        %925 = vmatprep.subr.bf16.mxu0 %v923
        %926 = vmatpush1.bf16.msra.mxu0 %v920
        %927 = vmatprep.subr.bf16.mxu0 0
        %928 = vmatpush1.bf16.msra.mxu0 0
        %929 = vmatprep.subr.bf16.mxu0 0
        %930 = vmatpush1.bf16.msra.mxu0 0
        %931 = vmatprep.subr.bf16.mxu0 0
        %932 = vmatpush1.bf16.msra.mxu0 0
        %933 = vmatprep.subr.bf16.mxu0 0
        %934 = vmatpush1.bf16.msra.mxu0 0
        %935 = vmatprep.subr.bf16.mxu0 0
        %936 = vmatpush1.bf16.msra.mxu0 0
        %937 = vmatprep.subr.bf16.mxu0 0
        %938 = vmatpush1.bf16.msra.mxu0 0
        %939 = vmatprep.subr.bf16.mxu0 0
        %940 = vmatpush1.bf16.msra.mxu0 0
        %941 = vmatprep.subr.bf16.mxu0 0
        %942 = vmatpush1.bf16.msra.mxu0 0
        %943 = vmatprep.subr.bf16.mxu0 0
        %944 = vmatpush1.bf16.msra.mxu0 0
        %945 = vmatprep.subr.bf16.mxu0 0
        %946 = vmatpush1.bf16.msra.mxu0 0
        %947 = vmatprep.subr.bf16.mxu0 0
        %948 = vmatpush1.bf16.msra.mxu0 0
        %949 = vmatprep.subr.bf16.mxu0 0
        %950 = vmatpush1.bf16.msra.mxu0 0
        %951 = vmatprep.subr.bf16.mxu0 0
        %952 = vmatpush1.bf16.msra.mxu0 0
        %953 = vmatprep.subr.bf16.mxu0 0
        %954 = vmatpush1.bf16.msra.mxu0 0
        %955 = vmatprep.subr.bf16.mxu0 0
        %956 = vmatpush1.bf16.msra.mxu0 0
        %957 = vmatprep.mubr.bf16.mxu0 0
        %958 = vmatmul.mubr.bf16.gmra.mrb[0].mxu0 %v917
        %v959 = vpop.f32.mrb[0].mxu0
        %v960 = vadd.f32 0.0, %v959
        %v961 = vpop.f32.mrb[0].mxu0
        %v962 = vadd.f32 0.0, %v961
        %v963 = vpop.f32.mrb[0].mxu0
        %v964 = vpop.f32.mrb[0].mxu0
        %965 = vdwg.mxu0
        %v967 = vcombine.high %v886, %v886
        %v969 = vunpack.c.l.s4 1983009808
        %v970 = vunpack.c.0.s8 %v969
        %v971 = vlaneseq
        %v972 = vshrl.u32 %v971, 7
        %v973 = vsub.s32 %v970, %v972
        %v974 = vrot.slane %v886, %v973
        %v976 = vunpack.c.l.s4 1983009808
        %v977 = vunpack.c.0.s8 %v976
        %v978 = vlaneseq
        %v979 = vshrl.u32 %v978, 7
        %v980 = vsub.s32 %v977, %v979
        %v981 = vrot.slane %v967, %v980
        %v982 = vcombine.high %v974, %v974
        %983 = vrot.lane.b32.xlu0 %v974, 15
        %v984 = vpop.permute.xlu0 %983
        %985 = vrot.lane.b32.xlu0 %v982, 15
        %v986 = vpop.permute.xlu0 %985
        %987 = vrot.lane.b32.xlu0 %v981, 15
        %v988 = vpop.permute.xlu0 %987
        %vm989 = vcmask 121856
        %v990 = vsel %vm989, %v984, %v986
        %v991 = vsel %vm989, %v986, %v988
        %v993 = vsel %vm439, %v885, 0
        %v996 = vsel %vm443, %v990, 0
        %v999 = vsel %vm443, %v991, 0
        %1001 = vmatprep.subr.bf16.mxu0 %v999
        %1002 = vmatpush1.bf16.msra.mxu0 %v996
        %1003 = vmatprep.subr.bf16.mxu0 0
        %1004 = vmatpush1.bf16.msra.mxu0 0
        %1005 = vmatprep.subr.bf16.mxu0 0
        %1006 = vmatpush1.bf16.msra.mxu0 0
        %1007 = vmatprep.subr.bf16.mxu0 0
        %1008 = vmatpush1.bf16.msra.mxu0 0
        %1009 = vmatprep.subr.bf16.mxu0 0
        %1010 = vmatpush1.bf16.msra.mxu0 0
        %1011 = vmatprep.subr.bf16.mxu0 0
        %1012 = vmatpush1.bf16.msra.mxu0 0
        %1013 = vmatprep.subr.bf16.mxu0 0
        %1014 = vmatpush1.bf16.msra.mxu0 0
        %1015 = vmatprep.subr.bf16.mxu0 0
        %1016 = vmatpush1.bf16.msra.mxu0 0
        %1017 = vmatprep.subr.bf16.mxu0 0
        %1018 = vmatpush1.bf16.msra.mxu0 0
        %1019 = vmatprep.subr.bf16.mxu0 0
        %1020 = vmatpush1.bf16.msra.mxu0 0
        %1021 = vmatprep.subr.bf16.mxu0 0
        %1022 = vmatpush1.bf16.msra.mxu0 0
        %1023 = vmatprep.subr.bf16.mxu0 0
        %1024 = vmatpush1.bf16.msra.mxu0 0
        %1025 = vmatprep.subr.bf16.mxu0 0
        %1026 = vmatpush1.bf16.msra.mxu0 0
        %1027 = vmatprep.subr.bf16.mxu0 0
        %1028 = vmatpush1.bf16.msra.mxu0 0
        %1029 = vmatprep.subr.bf16.mxu0 0
        %1030 = vmatpush1.bf16.msra.mxu0 0
        %1031 = vmatprep.subr.bf16.mxu0 0
        %1032 = vmatpush1.bf16.msra.mxu0 0
        %1033 = vmatprep.mubr.bf16.mxu0 0
        %1034 = vmatmul.mubr.bf16.gmra.mrb[0].mxu0 %v993
        %v1035 = vpop.f32.mrb[0].mxu0
        %v1036 = vadd.f32 %v960, %v1035
        %v1037 = vpop.f32.mrb[0].mxu0
        %v1038 = vadd.f32 %v962, %v1037
        %v1039 = vpop.f32.mrb[0].mxu0
        %v1040 = vpop.f32.mrb[0].mxu0
        %1041 = vdwg.mxu0
        %s1042 = scalar_lea.vmem %s4, 16
        %v1043 = vld [vmem:[%s1042] sm:$0x3]
        %v1044 = vld [vmem:[#allocation2 + $0x2] sm:$0x3f]
        %v1046 = vcombine.high %v1044, %v1044
        %v1048 = vunpack.c.l.s4 1983009808
        %v1049 = vunpack.c.0.s8 %v1048
        %v1050 = vlaneseq
        %v1051 = vshrl.u32 %v1050, 7
        %v1052 = vsub.s32 %v1049, %v1051
        %v1053 = vrot.slane %v1044, %v1052
        %v1055 = vunpack.c.l.s4 1983009808
        %v1056 = vunpack.c.0.s8 %v1055
        %v1057 = vlaneseq
        %v1058 = vshrl.u32 %v1057, 7
        %v1059 = vsub.s32 %v1056, %v1058
        %v1060 = vrot.slane %v1046, %v1059
        %v1061 = vcombine.high %v1053, %v1053
        %1062 = vrot.lane.b32.xlu0 %v1053, 111
        %v1063 = vpop.permute.xlu0 %1062
        %1064 = vrot.lane.b32.xlu0 %v1061, 111
        %v1065 = vpop.permute.xlu0 %1064
        %1066 = vrot.lane.b32.xlu0 %v1060, 111
        %v1067 = vpop.permute.xlu0 %1066
        %vm1068 = vcmask 908288
        %v1069 = vsel %vm1068, %v1063, %v1065
        %v1070 = vsel %vm1068, %v1065, %v1067
        %v1072 = vsel %vm439, %v1043, 0
        %v1075 = vsel %vm443, %v1069, 0
        %v1078 = vsel %vm443, %v1070, 0
        %1080 = vmatprep.subr.bf16.mxu0 %v1078
        %1081 = vmatpush1.bf16.msra.mxu0 %v1075
        %1082 = vmatprep.subr.bf16.mxu0 0
        %1083 = vmatpush1.bf16.msra.mxu0 0
        %1084 = vmatprep.subr.bf16.mxu0 0
        %1085 = vmatpush1.bf16.msra.mxu0 0
        %1086 = vmatprep.subr.bf16.mxu0 0
        %1087 = vmatpush1.bf16.msra.mxu0 0
        %1088 = vmatprep.subr.bf16.mxu0 0
        %1089 = vmatpush1.bf16.msra.mxu0 0
        %1090 = vmatprep.subr.bf16.mxu0 0
        %1091 = vmatpush1.bf16.msra.mxu0 0
        %1092 = vmatprep.subr.bf16.mxu0 0
        %1093 = vmatpush1.bf16.msra.mxu0 0
        %1094 = vmatprep.subr.bf16.mxu0 0
        %1095 = vmatpush1.bf16.msra.mxu0 0
        %1096 = vmatprep.subr.bf16.mxu0 0
        %1097 = vmatpush1.bf16.msra.mxu0 0
        %1098 = vmatprep.subr.bf16.mxu0 0
        %1099 = vmatpush1.bf16.msra.mxu0 0
        %1100 = vmatprep.subr.bf16.mxu0 0
        %1101 = vmatpush1.bf16.msra.mxu0 0
        %1102 = vmatprep.subr.bf16.mxu0 0
        %1103 = vmatpush1.bf16.msra.mxu0 0
        %1104 = vmatprep.subr.bf16.mxu0 0
        %1105 = vmatpush1.bf16.msra.mxu0 0
        %1106 = vmatprep.subr.bf16.mxu0 0
        %1107 = vmatpush1.bf16.msra.mxu0 0
        %1108 = vmatprep.subr.bf16.mxu0 0
        %1109 = vmatpush1.bf16.msra.mxu0 0
        %1110 = vmatprep.subr.bf16.mxu0 0
        %1111 = vmatpush1.bf16.msra.mxu0 0
        %1112 = vmatprep.mubr.bf16.mxu0 0
        %1113 = vmatmul.mubr.bf16.gmra.mrb[0].mxu0 %v1072
        %v1114 = vpop.f32.mrb[0].mxu0
        %v1115 = vadd.f32 0.0, %v1114
        %v1116 = vpop.f32.mrb[0].mxu0
        %v1117 = vadd.f32 0.0, %v1116
        %v1118 = vpop.f32.mrb[0].mxu0
        %v1119 = vpop.f32.mrb[0].mxu0
        %1120 = vdwg.mxu0
        %v1121 = vadd.f32 %v1036, %v1115
        %v1122 = vadd.f32 %v1038, %v1117
        %s1123 = scalar_lea.vmem %s1, 1
        %v1124 = vld [vmem:[%s1123] ss:$2 sm:$0x3]
        %v1126 = vlaneseq
        %v1127 = vshrl.u32 %v1126, 7
        %v1128 = vsub.s32 0, %v1127
        %v1129 = vrot.slane %v1124, %v1128
        %v1130 = vlaneseq
        %v1131 = vshrl.u32 %v1130, 7
        %v1132 = vsub.s32 1, %v1131
        %v1133 = vrot.slane %v1124, %v1132
        %v1136 = vmul.f32 %v1121, %v1129
        %v1137 = vmul.f32 %v1122, %v1133
        %v1138 = vadd.f32 %v882, %v1136
        %v1139 = vadd.f32 %v883, %v1137
        %v1140 = vld [vmem:[%s5] sm:$0xf]
        %1142 = vset.pattern.permute.xlu0 0
        %1143 = vperm.xlu0 %1142, %v1140
        %v1144 = vpop.permute.xlu0 %1143
        %v1146 = vadd.f32 %v1138, %v1144
        %v1147 = vadd.f32 %v1139, %v1144
        %v1148 = vmax.f32 %v1146, 0.0
        %v1149 = vmax.f32 %v1147, 0.0
        %v1150 = vpack.c.bf16 %v1148, %v1148
        %v1151 = vpack.c.bf16 %v1149, %v1149
        %v1152 = vld [vmem:[%s6] sm:$0xf]
        %v1153 = vld [vmem:[%s6 + $0x4] sm:$0xf]
        %v1154 = vld [vmem:[%s7] sm:$0xff]
        %v1155 = vld [vmem:[%s7 + $0x8] sm:$0xff]
        %1157 = vset.pattern.permute.xlu0 0
        %1158 = vperm.xlu0 %1157, %v1154
        %v1159 = vpop.permute.xlu0 %1158
        %1162 = vset.pattern.permute.xlu0 0
        %1163 = vperm.xlu0 %1162, %v1155
        %v1164 = vpop.permute.xlu0 %1163
        %v1168 = vunpack.c.l.b16 %v1152
        %v1169 = vunpack.c.l.b16 %v1153
        %v1170 = vpack.c.b16 %v1169, %v1168
        %v1172 = vsel %vm439, %v1170, 0
        %v1175 = vsel %vm443, %v1150, 0
        %v1178 = vsel %vm443, %v1151, 0
        %1180 = vmatprep.subr.bf16.mxu0 %v1178
        %1181 = vmatpush1.bf16.msra.mxu0 %v1175
        %1182 = vmatprep.subr.bf16.mxu0 0
        %1183 = vmatpush1.bf16.msra.mxu0 0
        %1184 = vmatprep.subr.bf16.mxu0 0
        %1185 = vmatpush1.bf16.msra.mxu0 0
        %1186 = vmatprep.subr.bf16.mxu0 0
        %1187 = vmatpush1.bf16.msra.mxu0 0
        %1188 = vmatprep.subr.bf16.mxu0 0
        %1189 = vmatpush1.bf16.msra.mxu0 0
        %1190 = vmatprep.subr.bf16.mxu0 0
        %1191 = vmatpush1.bf16.msra.mxu0 0
        %1192 = vmatprep.subr.bf16.mxu0 0
        %1193 = vmatpush1.bf16.msra.mxu0 0
        %1194 = vmatprep.subr.bf16.mxu0 0
        %1195 = vmatpush1.bf16.msra.mxu0 0
        %1196 = vmatprep.subr.bf16.mxu0 0
        %1197 = vmatpush1.bf16.msra.mxu0 0
        %1198 = vmatprep.subr.bf16.mxu0 0
        %1199 = vmatpush1.bf16.msra.mxu0 0
        %1200 = vmatprep.subr.bf16.mxu0 0
        %1201 = vmatpush1.bf16.msra.mxu0 0
        %1202 = vmatprep.subr.bf16.mxu0 0
        %1203 = vmatpush1.bf16.msra.mxu0 0
        %1204 = vmatprep.subr.bf16.mxu0 0
        %1205 = vmatpush1.bf16.msra.mxu0 0
        %1206 = vmatprep.subr.bf16.mxu0 0
        %1207 = vmatpush1.bf16.msra.mxu0 0
        %1208 = vmatprep.subr.bf16.mxu0 0
        %1209 = vmatpush1.bf16.msra.mxu0 0
        %1210 = vmatprep.subr.bf16.mxu0 0
        %1211 = vmatpush1.bf16.msra.mxu0 0
        %1212 = vmatprep.mubr.bf16.mxu0 0
        %1213 = vmatmul.mubr.bf16.gmra.mrb[0].mxu0 %v1172
        %v1214 = vpop.f32.mrb[0].mxu0
        %v1215 = vadd.f32 %v1159, %v1214
        %v1216 = vpop.f32.mrb[0].mxu0
        %v1217 = vadd.f32 %v1159, %v1216
        %v1218 = vpop.f32.mrb[0].mxu0
        %v1219 = vadd.f32 %v1164, %v1218
        %v1220 = vpop.f32.mrb[0].mxu0
        %v1221 = vadd.f32 %v1164, %v1220
        %1222 = vdwg.mxu0
        %v1223 = vld [vmem:[%s332] sm:$0xff]
        %v1224 = vld [vmem:[%s332 + $0x8] sm:$0xff]
        %v1225 = vunpack.c.l.bf16 %v1223
        %v1226 = vunpack.c.h.bf16 %v1223
        %v1227 = vunpack.c.l.bf16 %v1224
        %v1228 = vunpack.c.h.bf16 %v1224
        %v1229 = vadd.f32 %v1215, %v1225
        %v1230 = vadd.f32 %v1217, %v1226
        %v1231 = vadd.f32 %v1219, %v1227
        %v1232 = vadd.f32 %v1221, %v1228
        %v1233 = vmax.f32 %v1229, 0.0
        %v1234 = vmax.f32 %v1230, 0.0
        %v1235 = vmax.f32 %v1231, 0.0
        %v1236 = vmax.f32 %v1232, 0.0
        %1237 = vst [vmem:[%s323] sm:$0xff] %v1233
        %1238 = vst [vmem:[%s323 + $0x8] sm:$0xff] %v1234
        %1239 = vst [vmem:[%s323 + $0x10] sm:$0xff] %v1235
        %1240 = vst [vmem:[%s323 + $0x18] sm:$0xff] %v1236
        %s1241 = sand.u32 %s219, 1
        %s1242 = scalar_lea.sflag [#allocation4], %s1241
        %s1243 = sand.u32 %s219, 1
        %s1244 = smul.addr %s1243, 32
        %s1245 = scalar_lea.vmem [#allocation3], %s1244
        // Predicated region
        $region53: #{tpu_custom_call.1} parent=51 // pred_check
          %p1246 = pneg %p229
        $region54: #{tpu_custom_call.1} parent=51 // pred_check_branch
          %1248 = sbr.rel (%p1246) target = $region56
        $region55: #{tpu_custom_call.1} parent=51 // pred_region
          %s1249 = smul.u32 2, %s27
          %s1251 = ssub.s32 512, 512
          %1252 = vsyncadd %s1242, %s1251
          %s1253 = smul.addr %s26, 4
          %s1254 = sadd.s32 %s1249, %s1253
          %s1255 = smul.addr %s1254, 128
          %s1256 = scalar_lea.hbm %s8, %s1255
          %s1257 = sshll.u32 %s1245, 4
          %s1258 = int_to_ptr.vmem [resolvable:$true] %s1257
          %1263 = dma.vmem_to_hbm [thread:$0]  %s1258, 512, %s1256, %s1242, 256, 256, 16
        $region56: #{tpu_custom_call.1} parent=51 // pred_fallthru
          _
      $region52: #{tpu_custom_call.1} parent=5 // pred_fallthru
        _
      %p1264 = scmp.le.s32.totalorder 2, %s17
      // Predicated region
      $region57: #{tpu_custom_call.1} parent=5 // pred_check
        %p1265 = pneg %p1264
      $region58: #{tpu_custom_call.1} parent=5 // pred_check_branch
        %1267 = sbr.rel (%p1265) target = $region60
      $region59: #{tpu_custom_call.1} parent=5 // pred_region
        %s1268 = ssub.s32 %s17, 2
        // Predicated region
        $region61: #{tpu_custom_call.1} parent=59 // pred_check
          %p1269 = pneg %p235
        $region62: #{tpu_custom_call.1} parent=59 // pred_check_branch
          %1271 = sbr.rel (%p1269) target = $region64
        $region63: #{tpu_custom_call.1} parent=59 // pred_region
          %s1272 = sand.u32 %s220, 1
          %s1273 = scalar_lea.sflag [#allocation4], %s1272
          %s1274 = sand.u32 %s220, 1
          %s1275 = smul.addr %s1274, 32
          %s1276 = scalar_lea.vmem [#allocation3], %s1275
          %1277 = dma.done %s1273, 512
        $region64: #{tpu_custom_call.1} parent=59 // pred_fallthru
          _
      $region60: #{tpu_custom_call.1} parent=5 // pred_fallthru
        _
    $region6: #{tpu_custom_call.1} parent=1 // loop_footer
      %s21 = sadd.s32 1, %s17
    $region7: #{tpu_custom_call.1} parent=1 // loop_footer_branch
      %16 = sbr.rel target = $region3
    $region8: #{tpu_custom_call.1} parent=1 // loop_exit
      _
    %1278 = vsyncpa [#allocation4], 1
    %s1279 = scalar_lea.sflag [#allocation4], 1
    %1280 = vsyncpa %s1279, 1

</llo_original>
